<compile_context>
chip_gen: v7x
topology: tpu7x:2x2x1
jax: 0.10.0
libtpu: 0.0.40
codegen_flags: <defaults>
</compile_context>

<pallas_src>
import functools
import math

import jax
import jax.numpy as jnp
from jax.experimental import pallas as pl
from jax.experimental.pallas import tpu as pltpu


def _round_up(v, m):
    return ((v + m - 1) // m) * m


def _default_relu_bf16():
    # bf16 VALU exists on v6e / v7x; keep f32 clamps on older generations (v5e etc).
    try:
        kind = jax.devices()[0].device_kind.lower()
        return ("v6" in kind) or ("v7" in kind)
    except Exception:
        return False


# ---------------------------------------------------------------------------
# Fused kernel: per-point MLP (conv1d k=1 stack) + global max pool + fc head.
# ---------------------------------------------------------------------------
def _make_pointnet_kernel(tn, relu_bf16):
    n_chunks = tn // 128

    def _relu_to_bf16(v):
        if relu_bf16:
            # cast first, clamp at bf16 width (half the VPU cycles on v6e/v7x);
            # numerically identical to clamp-then-cast (rounding preserves sign).
            return jnp.maximum(v.astype(jnp.bfloat16), jnp.bfloat16(0.0))
        return jnp.maximum(v, 0.0).astype(jnp.bfloat16)

    def kernel(x_ref, w1_ref, b1_ref, w2_ref, b2_ref, w3_ref, b3_ref,
               w4_ref, b4_ref, w5_ref, b5_ref, out_ref, m_ref):
        n = pl.program_id(1)

        @pl.when(n == 0)
        def _init():
            # Accumulates PRE-activation conv3 values (bias/ReLU deferred), so the
            # max identity must be -inf, not 0.
            m_ref[...] = jnp.full(m_ref.shape, -jnp.inf, m_ref.dtype)

        x = x_ref[0]                                   # (3, tn)  f32
        w1 = w1_ref[...]                               # (64, 3)  f32

        # conv1 (Cin=3): three broadcast multiply-adds on the VPU (exact, cheap).
        h = (w1[:, 0:1] * x[0:1, :]
             + w1[:, 1:2] * x[1:2, :]
             + w1[:, 2:3] * x[2:3, :]
             + b1_ref[...])
        h = _relu_to_bf16(h)                           # (64, tn)  bf16

        # conv2 (k=1): bf16 MXU matmul, f32 accumulate.
        h = jnp.dot(w2_ref[...], h, preferred_element_type=jnp.float32) + b2_ref[...]
        h = _relu_to_bf16(h)                           # (128, tn) bf16

        # conv3 pre-activation ONLY (bias + ReLU deferred past the max pool).
        s = jnp.dot(w3_ref[...], h, preferred_element_type=jnp.float32)  # (256, tn) f32

        # Lane-partial max fold into the (256, 128) scratch: pure VPU vmax on
        # (8,128)-aligned static slices; no per-tile cross-lane reduce, no per-tile
        # output writeback.
        m = m_ref[...]
        for c in range(n_chunks):
            m = jnp.maximum(m, s[:, c * 128:(c + 1) * 128])
        m_ref[...] = m

        @pl.when(n == pl.num_programs(1) - 1)
        def _epilogue():
            # One cross-lane reduce per batch + deferred conv3 bias / ReLU.
            gcol = jnp.max(m_ref[...], axis=1, keepdims=True) + b3_ref[...]  # (256, 1)
            gcol = jnp.maximum(gcol, 0.0).astype(jnp.bfloat16)

            # fc head, column-oriented.  g is replicated across 128 lanes so both
            # matmuls keep MXU-friendly shapes; every output column is identical
            # and column 0 is stored.  Runs once per batch (trivial cost).
            g_b = jnp.broadcast_to(gcol, (gcol.shape[0], 128))                 # (256, 128)
            f = jnp.dot(w4_ref[...], g_b, preferred_element_type=jnp.float32)  # (128, 128)
            f = jnp.maximum(f + b4_ref[...], 0.0).astype(jnp.bfloat16)
            y = jnp.dot(w5_ref[...], f, preferred_element_type=jnp.float32) + b5_ref[...]
            out_ref[...] = y[:, 0:1][None]                                     # (1, nc_pad, 1)

    return kernel


def pointnet_plusplus_forward(x_ncw, params, *, tn=8192, relu_bf16=None):
    """Forward pass.

    x_ncw:  (B, 3, N) float32, PyTorch NCW layout (consumed directly).
    params: PyTorch-shaped parameters, see init_params().
    tn:     point-tile size (clamped to a multiple of 128).
    Returns (B, num_classes) float32 logits.
    """
    B, cin, N = x_ncw.shape
    assert cin == 3
    x_ncw = x_ncw.astype(jnp.float32)
    w1, b1, w2, b2, w3, b3, w4, b4, w5, b5 = params
    num_classes = w5.shape[0]
    if relu_bf16 is None:
        relu_bf16 = _default_relu_bf16()

    # ---- parameter prep (tiny, XLA-side, once per call) --------------------
    cw1 = w1[:, :, 0].astype(jnp.float32)        # (64, 3)    conv1 stays f32 (VPU)
    cb1 = b1.reshape(-1, 1).astype(jnp.float32)  # (64, 1)
    cw2 = w2[:, :, 0].astype(jnp.bfloat16)       # (128, 64)
    cb2 = b2.reshape(-1, 1).astype(jnp.float32)  # (128, 1)
    cw3 = w3[:, :, 0].astype(jnp.bfloat16)       # (256, 128)
    cb3 = b3.reshape(-1, 1).astype(jnp.float32)  # (256, 1)   added in the epilogue

    nc_pad = _round_up(max(num_classes, 1), 128)
    fw4 = w4.astype(jnp.bfloat16)                # (128, 256)
    fb4 = b4.reshape(-1, 1).astype(jnp.float32)  # (128, 1)
    fw5 = jnp.zeros((nc_pad, 128), jnp.bfloat16).at[:num_classes].set(
        w5.astype(jnp.bfloat16))                 # (nc_pad, 128)
    fb5 = jnp.zeros((nc_pad, 1), jnp.float32).at[:num_classes, 0].set(
        b5.astype(jnp.float32))                  # (nc_pad, 1)

    # ---- point-dimension tiling --------------------------------------------
    tn = max(128, min((int(tn) // 128) * 128, _round_up(N, 128)))
    n_pad = _round_up(N, tn)
    if n_pad != N:
        # Edge-replicate the last point: identical activations, max unchanged.
        pad = jnp.broadcast_to(x_ncw[:, :, -1:], (B, 3, n_pad - N))
        x_ncw = jnp.concatenate([x_ncw, pad], axis=2)
    n_tiles = n_pad // tn

    full = lambda a: pl.BlockSpec(a.shape, lambda b, n: (0,) * a.ndim)

    kernel = _make_pointnet_kernel(tn, relu_bf16)

    out = pl.pallas_call(
        kernel,
        out_shape=jax.ShapeDtypeStruct((B, nc_pad, 1), jnp.float32),
        grid_spec=pltpu.PrefetchScalarGridSpec(
            num_scalar_prefetch=0,
            grid=(B, n_tiles),
            in_specs=[
                pl.BlockSpec((1, 3, tn), lambda b, n: (b, 0, n)),   # x tile
                full(cw1), full(cb1),
                full(cw2), full(cb2),
                full(cw3), full(cb3),
                full(fw4), full(fb4),
                full(fw5), full(fb5),
            ],
            out_specs=pl.BlockSpec((1, nc_pad, 1), lambda b, n: (b, 0, 0)),
            scratch_shapes=[pltpu.VMEM((256, 128), jnp.float32)],
        ),
        compiler_params=pltpu.CompilerParams(
            dimension_semantics=("parallel", "arbitrary"),
            vmem_limit_bytes=32 * 1024 * 1024,
        ),
    )(x_ncw, cw1, cb1, cw2, cb2, cw3, cb3, fw4, fb4, fw5, fb5)

    return out[:, :num_classes, 0]


def init_params(key, num_classes=40):
    """Deterministic synthetic parameters in PyTorch-native shapes:
    conv weight (Cout, Cin, 1), conv bias (Cout,), fc weight (Cout, Cin), fc bias (Cout,)."""
    ks = jax.random.split(key, 10)

    def _u(k, shape, fan_in):
        s = 1.0 / math.sqrt(fan_in)
        return jax.random.uniform(k, shape, jnp.float32, -s, s)

    w1 = _u(ks[0], (64, 3, 1), 3);            b1 = _u(ks[1], (64,), 3)
    w2 = _u(ks[2], (128, 64, 1), 64);         b2 = _u(ks[3], (128,), 64)
    w3 = _u(ks[4], (256, 128, 1), 128);       b3 = _u(ks[5], (256,), 128)
    w4 = _u(ks[6], (128, 256), 256);          b4 = _u(ks[7], (128,), 256)
    w5 = _u(ks[8], (num_classes, 128), 128);  b5 = _u(ks[9], (num_classes,), 128)
    return (w1, b1, w2, b2, w3, b3, w4, b4, w5, b5)


def reference_forward(x_ncw, params):
    """Pure-JAX f32 reference for correctness checking."""
    w1, b1, w2, b2, w3, b3, w4, b4, w5, b5 = params
    x = jnp.transpose(x_ncw, (0, 2, 1))                        # (B, N, 3)
    h = jax.nn.relu(x @ w1[:, :, 0].T + b1)
    h = jax.nn.relu(h @ w2[:, :, 0].T + b2)
    h = jax.nn.relu(h @ w3[:, :, 0].T + b3)
    g = jnp.max(h, axis=1)                                     # (B, 256)
    f = jax.nn.relu(g @ w4.T + b4)
    return f @ w5.T + b5


if __name__ == "__main__":
    key = jax.random.PRNGKey(0)
    k_x, k_p, k_x2 = jax.random.split(key, 3)

    B, N, num_classes = 2, 384, 40
    x = jax.random.normal(k_x, (B, 3, N), dtype=jnp.float32)   # PyTorch NCW input
    params = init_params(k_p, num_classes=num_classes)

    # tn=128 at this small N exercises the multi-tile accumulation path
    # (-inf init -> 3 partial-max folds -> epilogue per batch).
    fwd_small_tile = jax.jit(functools.partial(pointnet_plusplus_forward, tn=128))
    out = jax.block_until_ready(fwd_small_tile(x, params))
    ref = reference_forward(x, params)
    assert out.shape == (B, num_classes)
    err = float(jnp.max(jnp.abs(out - ref)))
    # bf16 matmul operands (f32 accumulation) -> slightly looser tolerance vs f32 ref.
    assert err < 3e-2, f"mismatch (multi-tile path): max abs err = {err}"

    # Default tile size + an N that is not a multiple of 128 exercises edge-padding.
    N2 = 200
    x2 = jax.random.normal(k_x2, (B, 3, N2), dtype=jnp.float32)
    fwd_default = jax.jit(pointnet_plusplus_forward)
    out2 = jax.block_until_ready(fwd_default(x2, params))
    ref2 = reference_forward(x2, params)
    err2 = float(jnp.max(jnp.abs(out2 - ref2)))
    assert err2 < 3e-2, f"mismatch (padded path): max abs err = {err2}"

    print("KERNEL_OK")
</pallas_src>

<mosaic_0001>
module attributes {stable_mosaic.version = 11 : i64} {
  func.func @kernel(%arg0: i32, %arg1: i32, %arg2: memref<1x3x128xf32, #tpu.memory_space<vmem>>, %arg3: memref<64x3xf32, #tpu.memory_space<vmem>>, %arg4: memref<64x1xf32, #tpu.memory_space<vmem>>, %arg5: memref<128x64xbf16, #tpu.memory_space<vmem>>, %arg6: memref<128x1xf32, #tpu.memory_space<vmem>>, %arg7: memref<256x128xbf16, #tpu.memory_space<vmem>>, %arg8: memref<256x1xf32, #tpu.memory_space<vmem>>, %arg9: memref<128x256xbf16, #tpu.memory_space<vmem>>, %arg10: memref<128x1xf32, #tpu.memory_space<vmem>>, %arg11: memref<128x128xbf16, #tpu.memory_space<vmem>>, %arg12: memref<128x1xf32, #tpu.memory_space<vmem>>, %arg13: memref<1x128x1xf32, #tpu.memory_space<vmem>>, %arg14: memref<256x128xf32, #tpu.memory_space<vmem>>) attributes {dimension_semantics = [#tpu.dimension_semantics<parallel>, #tpu.dimension_semantics<arbitrary>], iteration_bounds = array<i64: 2, 3>, scalar_prefetch = 0 : i64, scratch_operands = 1 : i64, tpu.core_type = #tpu.core_type<tc>, window_params = [{transform_indices = @transform_0, window_bounds = array<i64: 1, 3, 128>}, {pipeline_mode = #tpu.pipeline_mode<synchronous>, transform_indices = @transform_1, window_bounds = array<i64: 64, 3>}, {pipeline_mode = #tpu.pipeline_mode<synchronous>, transform_indices = @transform_2, window_bounds = array<i64: 64, 1>}, {pipeline_mode = #tpu.pipeline_mode<synchronous>, transform_indices = @transform_3, window_bounds = array<i64: 128, 64>}, {pipeline_mode = #tpu.pipeline_mode<synchronous>, transform_indices = @transform_4, window_bounds = array<i64: 128, 1>}, {pipeline_mode = #tpu.pipeline_mode<synchronous>, transform_indices = @transform_5, window_bounds = array<i64: 256, 128>}, {pipeline_mode = #tpu.pipeline_mode<synchronous>, transform_indices = @transform_6, window_bounds = array<i64: 256, 1>}, {pipeline_mode = #tpu.pipeline_mode<synchronous>, transform_indices = @transform_7, window_bounds = array<i64: 128, 256>}, {pipeline_mode = #tpu.pipeline_mode<synchronous>, transform_indices = @transform_8, window_bounds = array<i64: 128, 1>}, {pipeline_mode = #tpu.pipeline_mode<synchronous>, transform_indices = @transform_9, window_bounds = array<i64: 128, 128>}, {pipeline_mode = #tpu.pipeline_mode<synchronous>, transform_indices = @transform_10, window_bounds = array<i64: 128, 1>}, {transform_indices = @transform_11, window_bounds = array<i64: 1, 128, 1>}]} {
    %c0_i32 = arith.constant 0 : i32
    %0 = arith.cmpi eq, %arg1, %c0_i32 : i32
    %1 = arith.extui %0 : i1 to i32
    %c0_i32_0 = arith.constant 0 : i32
    %2 = arith.cmpi ne, %1, %c0_i32_0 : i32
    scf.if %2 {
      %cst_21 = arith.constant 0xFF800000 : f32
      %45 = vector.broadcast %cst_21 : f32 to vector<256x128xf32>
      %c0_22 = arith.constant 0 : index
      %c0_23 = arith.constant 0 : index
      %46 = vector.load %arg14[%c0_22, %c0_23] : memref<256x128xf32, #tpu.memory_space<vmem>>, vector<256x128xf32>
      tpu.vector_store %arg14[%c0_22, %c0_23], %45 {strides = array<i32>} : memref<256x128xf32, #tpu.memory_space<vmem>>, vector<256x128xf32>,
    } else {
    }
    %c0 = arith.constant 0 : index
    %c0_1 = arith.constant 0 : index
    %c0_2 = arith.constant 0 : index
    %3 = vector.load %arg2[%c0, %c0_1, %c0_2] : memref<1x3x128xf32, #tpu.memory_space<vmem>>, vector<1x3x128xf32>
    %4 = vector.shape_cast %3 : vector<1x3x128xf32> to vector<3x128xf32>
    %c0_3 = arith.constant 0 : index
    %c0_4 = arith.constant 0 : index
    %5 = vector.load %arg3[%c0_3, %c0_4] : memref<64x3xf32, #tpu.memory_space<vmem>>, vector<64x3xf32>
    %6 = vector.extract_strided_slice %5 {offsets = [0, 0], sizes = [64, 1], strides = [1, 1]} : vector<64x3xf32> to vector<64x1xf32>
    %7 = vector.extract_strided_slice %4 {offsets = [0, 0], sizes = [1, 128], strides = [1, 1]} : vector<3x128xf32> to vector<1x128xf32>
    %8 = vector.broadcast %6 : vector<64x1xf32> to vector<64x128xf32>
    %9 = vector.broadcast %7 : vector<1x128xf32> to vector<64x128xf32>
    %10 = arith.mulf %8, %9 : vector<64x128xf32>
    %11 = vector.extract_strided_slice %5 {offsets = [0, 1], sizes = [64, 1], strides = [1, 1]} : vector<64x3xf32> to vector<64x1xf32>
    %12 = vector.extract_strided_slice %4 {offsets = [1, 0], sizes = [1, 128], strides = [1, 1]} : vector<3x128xf32> to vector<1x128xf32>
    %13 = vector.broadcast %11 : vector<64x1xf32> to vector<64x128xf32>
    %14 = vector.broadcast %12 : vector<1x128xf32> to vector<64x128xf32>
    %15 = arith.mulf %13, %14 : vector<64x128xf32>
    %16 = arith.addf %10, %15 : vector<64x128xf32>
    %17 = vector.extract_strided_slice %5 {offsets = [0, 2], sizes = [64, 1], strides = [1, 1]} : vector<64x3xf32> to vector<64x1xf32>
    %18 = vector.extract_strided_slice %4 {offsets = [2, 0], sizes = [1, 128], strides = [1, 1]} : vector<3x128xf32> to vector<1x128xf32>
    %19 = vector.broadcast %17 : vector<64x1xf32> to vector<64x128xf32>
    %20 = vector.broadcast %18 : vector<1x128xf32> to vector<64x128xf32>
    %21 = arith.mulf %19, %20 : vector<64x128xf32>
    %22 = arith.addf %16, %21 : vector<64x128xf32>
    %c0_5 = arith.constant 0 : index
    %c0_6 = arith.constant 0 : index
    %23 = vector.load %arg4[%c0_5, %c0_6] : memref<64x1xf32, #tpu.memory_space<vmem>>, vector<64x1xf32>
    %24 = vector.broadcast %23 : vector<64x1xf32> to vector<64x128xf32>
    %25 = arith.addf %22, %24 : vector<64x128xf32>
    %cst = arith.constant 0.000000e+00 : f32
    %26 = vector.broadcast %cst : f32 to vector<64x128xf32>
    %27 = arith.maximumf %25, %26 : vector<64x128xf32>
    %28 = arith.truncf %27 : vector<64x128xf32> to vector<64x128xbf16>
    %c0_7 = arith.constant 0 : index
    %c0_8 = arith.constant 0 : index
    %29 = vector.load %arg5[%c0_7, %c0_8] : memref<128x64xbf16, #tpu.memory_space<vmem>>, vector<128x64xbf16>
    %cst_9 = arith.constant dense<0.000000e+00> : vector<128x128xf32>
    %30 = tpu.matmul %29, %28, %cst_9 {dimension_numbers = #tpu.dot_dimension_numbers<[1], [0], [0], [1], [0, 0, 1, 1], [], []>} : vector<128x64xbf16>, vector<64x128xbf16>, vector<128x128xf32> -> vector<128x128xf32>
    %c0_10 = arith.constant 0 : index
    %c0_11 = arith.constant 0 : index
    %31 = vector.load %arg6[%c0_10, %c0_11] : memref<128x1xf32, #tpu.memory_space<vmem>>, vector<128x1xf32>
    %32 = vector.broadcast %31 : vector<128x1xf32> to vector<128x128xf32>
    %33 = arith.addf %30, %32 : vector<128x128xf32>
    %cst_12 = arith.constant 0.000000e+00 : f32
    %34 = vector.broadcast %cst_12 : f32 to vector<128x128xf32>
    %35 = arith.maximumf %33, %34 : vector<128x128xf32>
    %36 = arith.truncf %35 : vector<128x128xf32> to vector<128x128xbf16>
    %c0_13 = arith.constant 0 : index
    %c0_14 = arith.constant 0 : index
    %37 = vector.load %arg7[%c0_13, %c0_14] : memref<256x128xbf16, #tpu.memory_space<vmem>>, vector<256x128xbf16>
    %cst_15 = arith.constant dense<0.000000e+00> : vector<256x128xf32>
    %38 = tpu.matmul %37, %36, %cst_15 {dimension_numbers = #tpu.dot_dimension_numbers<[1], [0], [0], [1], [0, 0, 1, 1], [], []>} : vector<256x128xbf16>, vector<128x128xbf16>, vector<256x128xf32> -> vector<256x128xf32>
    %c0_16 = arith.constant 0 : index
    %c0_17 = arith.constant 0 : index
    %39 = vector.load %arg14[%c0_16, %c0_17] : memref<256x128xf32, #tpu.memory_space<vmem>>, vector<256x128xf32>
    %40 = arith.maximumf %39, %38 : vector<256x128xf32>
    %c0_18 = arith.constant 0 : index
    %c0_19 = arith.constant 0 : index
    %41 = vector.load %arg14[%c0_18, %c0_19] : memref<256x128xf32, #tpu.memory_space<vmem>>, vector<256x128xf32>
    tpu.vector_store %arg14[%c0_18, %c0_19], %40 {strides = array<i32>} : memref<256x128xf32, #tpu.memory_space<vmem>>, vector<256x128xf32>,
    %c2_i32 = arith.constant 2 : i32
    %42 = arith.cmpi eq, %arg1, %c2_i32 : i32
    %43 = arith.extui %42 : i1 to i32
    %c0_i32_20 = arith.constant 0 : i32
    %44 = arith.cmpi ne, %43, %c0_i32_20 : i32
    scf.if %44 {
      %c0_21 = arith.constant 0 : index
      %c0_22 = arith.constant 0 : index
      %45 = vector.load %arg14[%c0_21, %c0_22] : memref<256x128xf32, #tpu.memory_space<vmem>>, vector<256x128xf32>
      %cst_23 = arith.constant dense<0xFF800000> : vector<256xf32>
      %46 = vector.multi_reduction <maximumf>, %45, %cst_23 [1] : vector<256x128xf32> to vector<256xf32>
      %47 = vector.shape_cast %46 : vector<256xf32> to vector<256x1xf32>
      %c0_24 = arith.constant 0 : index
      %c0_25 = arith.constant 0 : index
      %48 = vector.load %arg8[%c0_24, %c0_25] : memref<256x1xf32, #tpu.memory_space<vmem>>, vector<256x1xf32>
      %49 = arith.addf %47, %48 : vector<256x1xf32>
      %cst_26 = arith.constant 0.000000e+00 : f32
      %50 = vector.broadcast %cst_26 : f32 to vector<256x1xf32>
      %51 = arith.maximumf %49, %50 : vector<256x1xf32>
      %52 = arith.truncf %51 : vector<256x1xf32> to vector<256x1xbf16>
      %53 = vector.shape_cast %52 : vector<256x1xbf16> to vector<256x1xbf16>
      %54 = vector.broadcast %53 : vector<256x1xbf16> to vector<256x128xbf16>
      %c0_27 = arith.constant 0 : index
      %c0_28 = arith.constant 0 : index
      %55 = vector.load %arg9[%c0_27, %c0_28] : memref<128x256xbf16, #tpu.memory_space<vmem>>, vector<128x256xbf16>
      %cst_29 = arith.constant dense<0.000000e+00> : vector<128x128xf32>
      %56 = tpu.matmul %55, %54, %cst_29 {dimension_numbers = #tpu.dot_dimension_numbers<[1], [0], [0], [1], [0, 0, 1, 1], [], []>} : vector<128x256xbf16>, vector<256x128xbf16>, vector<128x128xf32> -> vector<128x128xf32>
      %c0_30 = arith.constant 0 : index
      %c0_31 = arith.constant 0 : index
      %57 = vector.load %arg10[%c0_30, %c0_31] : memref<128x1xf32, #tpu.memory_space<vmem>>, vector<128x1xf32>
      %58 = vector.broadcast %57 : vector<128x1xf32> to vector<128x128xf32>
      %59 = arith.addf %56, %58 : vector<128x128xf32>
      %cst_32 = arith.constant 0.000000e+00 : f32
      %60 = vector.broadcast %cst_32 : f32 to vector<128x128xf32>
      %61 = arith.maximumf %59, %60 : vector<128x128xf32>
      %62 = arith.truncf %61 : vector<128x128xf32> to vector<128x128xbf16>
      %c0_33 = arith.constant 0 : index
      %c0_34 = arith.constant 0 : index
      %63 = vector.load %arg11[%c0_33, %c0_34] : memref<128x128xbf16, #tpu.memory_space<vmem>>, vector<128x128xbf16>
      %cst_35 = arith.constant dense<0.000000e+00> : vector<128x128xf32>
      %64 = tpu.matmul %63, %62, %cst_35 {dimension_numbers = #tpu.dot_dimension_numbers<[1], [0], [0], [1], [0, 0, 1, 1], [], []>} : vector<128x128xbf16>, vector<128x128xbf16>, vector<128x128xf32> -> vector<128x128xf32>
      %c0_36 = arith.constant 0 : index
      %c0_37 = arith.constant 0 : index
      %65 = vector.load %arg12[%c0_36, %c0_37] : memref<128x1xf32, #tpu.memory_space<vmem>>, vector<128x1xf32>
      %66 = vector.broadcast %65 : vector<128x1xf32> to vector<128x128xf32>
      %67 = arith.addf %64, %66 : vector<128x128xf32>
      %68 = vector.extract_strided_slice %67 {offsets = [0, 0], sizes = [128, 1], strides = [1, 1]} : vector<128x128xf32> to vector<128x1xf32>
      %69 = vector.shape_cast %68 : vector<128x1xf32> to vector<1x128x1xf32>
      %c0_38 = arith.constant 0 : index
      %c0_39 = arith.constant 0 : index
      %c0_40 = arith.constant 0 : index
      %70 = vector.load %arg13[%c0_38, %c0_39, %c0_40] : memref<1x128x1xf32, #tpu.memory_space<vmem>>, vector<1x128x1xf32>
      tpu.vector_store %arg13[%c0_38, %c0_39, %c0_40], %69 {strides = array<i32>} : memref<1x128x1xf32, #tpu.memory_space<vmem>>, vector<1x128x1xf32>,
    } else {
    }
    return
  }
  func.func @transform_0(%arg0: i32, %arg1: i32) -> (i32, i32, i32) {
    %c0_i32 = arith.constant 0 : i32
    %c0_i32_0 = arith.constant 0 : i32
    return %arg0, %c0_i32, %arg1 : i32, i32, i32
  }
  func.func @transform_1(%arg0: i32, %arg1: i32) -> (i32, i32) {
    %c0_i32 = arith.constant 0 : i32
    %c0_i32_0 = arith.constant 0 : i32
    %c0_i32_1 = arith.constant 0 : i32
    return %c0_i32, %c0_i32_0 : i32, i32
  }
  func.func @transform_2(%arg0: i32, %arg1: i32) -> (i32, i32) {
    %c0_i32 = arith.constant 0 : i32
    %c0_i32_0 = arith.constant 0 : i32
    %c0_i32_1 = arith.constant 0 : i32
    return %c0_i32, %c0_i32_0 : i32, i32
  }
  func.func @transform_3(%arg0: i32, %arg1: i32) -> (i32, i32) {
    %c0_i32 = arith.constant 0 : i32
    %c0_i32_0 = arith.constant 0 : i32
    %c0_i32_1 = arith.constant 0 : i32
    return %c0_i32, %c0_i32_0 : i32, i32
  }
  func.func @transform_4(%arg0: i32, %arg1: i32) -> (i32, i32) {
    %c0_i32 = arith.constant 0 : i32
    %c0_i32_0 = arith.constant 0 : i32
    %c0_i32_1 = arith.constant 0 : i32
    return %c0_i32, %c0_i32_0 : i32, i32
  }
  func.func @transform_5(%arg0: i32, %arg1: i32) -> (i32, i32) {
    %c0_i32 = arith.constant 0 : i32
    %c0_i32_0 = arith.constant 0 : i32
    %c0_i32_1 = arith.constant 0 : i32
    return %c0_i32, %c0_i32_0 : i32, i32
  }
  func.func @transform_6(%arg0: i32, %arg1: i32) -> (i32, i32) {
    %c0_i32 = arith.constant 0 : i32
    %c0_i32_0 = arith.constant 0 : i32
    %c0_i32_1 = arith.constant 0 : i32
    return %c0_i32, %c0_i32_0 : i32, i32
  }
  func.func @transform_7(%arg0: i32, %arg1: i32) -> (i32, i32) {
    %c0_i32 = arith.constant 0 : i32
    %c0_i32_0 = arith.constant 0 : i32
    %c0_i32_1 = arith.constant 0 : i32
    return %c0_i32, %c0_i32_0 : i32, i32
  }
  func.func @transform_8(%arg0: i32, %arg1: i32) -> (i32, i32) {
    %c0_i32 = arith.constant 0 : i32
    %c0_i32_0 = arith.constant 0 : i32
    %c0_i32_1 = arith.constant 0 : i32
    return %c0_i32, %c0_i32_0 : i32, i32
  }
  func.func @transform_9(%arg0: i32, %arg1: i32) -> (i32, i32) {
    %c0_i32 = arith.constant 0 : i32
    %c0_i32_0 = arith.constant 0 : i32
    %c0_i32_1 = arith.constant 0 : i32
    return %c0_i32, %c0_i32_0 : i32, i32
  }
  func.func @transform_10(%arg0: i32, %arg1: i32) -> (i32, i32) {
    %c0_i32 = arith.constant 0 : i32
    %c0_i32_0 = arith.constant 0 : i32
    %c0_i32_1 = arith.constant 0 : i32
    return %c0_i32, %c0_i32_0 : i32, i32
  }
  func.func @transform_11(%arg0: i32, %arg1: i32) -> (i32, i32, i32) {
    %c0_i32 = arith.constant 0 : i32
    %c0_i32_0 = arith.constant 0 : i32
    %c0_i32_1 = arith.constant 0 : i32
    return %arg0, %c0_i32, %c0_i32_0 : i32, i32, i32
  }
}

</mosaic_0001>

<llo_original>
// kernel: pointnet_plusplus_forward.1
$region0: #{pointnet_plusplus_forward.1}
  #allocation0 [shape = 'u32[]', space=smem, size = 0x4, offset = 0x4, fixed_abs, tag = 'smem constant byte address 0x4 - core index']
  #allocation1 [shape = 'u32[144,128]{1,0:T(1,128)}', space=vmem, size = 0x12000, scoped, tag = 'internal scratch']
  #allocation2 [shape = 'f32[256,128]{1,0:T(8,128)}', space=vmem, size = 0x20000, scoped, tag = 'scratch operand']
  %s0 = inlined_call_operand.vmem [shape: f32[2,3,384], index: 0, kind: input, shape index: {}]
  %s1 = inlined_call_operand.vmem [shape: f32[64,3], index: 1, kind: input, shape index: {}]
  %s2 = inlined_call_operand.vmem [shape: f32[64,1], index: 2, kind: input, shape index: {}]
  %s3 = inlined_call_operand.vmem [shape: bf16[128,64], index: 3, kind: input, shape index: {}]
  %s4 = inlined_call_operand.vmem [shape: f32[128,1], index: 4, kind: input, shape index: {}]
  %s5 = inlined_call_operand.vmem [shape: bf16[256,128], index: 5, kind: input, shape index: {}]
  %s6 = inlined_call_operand.vmem [shape: f32[256,1], index: 6, kind: input, shape index: {}]
  %s7 = inlined_call_operand.vmem [shape: bf16[128,256], index: 7, kind: input, shape index: {}]
  %s8 = inlined_call_operand.vmem [shape: f32[128,1], index: 8, kind: input, shape index: {}]
  %s9 = inlined_call_operand.vmem [shape: bf16[128,128], index: 9, kind: input, shape index: {}]
  %s10 = inlined_call_operand.vmem [shape: f32[128,1], index: 10, kind: input, shape index: {}]
  %s11 = inlined_call_operand.vmem [shape: f32[2,128,1], index: 11, kind: output, shape index: {}]
  %s12 = sld [smem:[#allocation0]]
  $region85: #{pointnet_plusplus_forward.1} parent=0
    _
  %s14 = ssub.s32 1, %s12
  %s15 = scalar_select 0, %s14, %s12
  loop: start=0, step=1, limit=8
  $region2: #{pointnet_plusplus_forward.1} parent=0 // loop_pre_header
    _
  $region3: #{pointnet_plusplus_forward.1} parent=0 // loop_header
    %s17 = sphi 0, %s21
    %p18 = scmp.ge.s32.totalorder %s17, 8
    %s24 = sphi 0, %s36
    %s25 = sphi 0, %s32
    %s26 = sphi 0, %s24
    %s27 = sphi 0, %s25
    %s28 = sphi 0, %s26
    %s29 = sphi 0, %s27
    %s41 = sphi 0, %s43
    %s44 = sphi 0, %s41
    %s45 = sphi 0, %s44
    %s61 = sphi 0, %s45
    %s65 = sphi 0, %s65
    %s67 = sphi 0, %s65
    %s68 = sphi 0, %s67
    %s82 = sphi 0, %s68
    %s86 = sphi 0, %s86
    %s88 = sphi 0, %s86
    %s89 = sphi 0, %s88
    %s103 = sphi 0, %s89
    %s107 = sphi 0, %s107
    %s109 = sphi 0, %s107
    %s110 = sphi 0, %s109
    %s124 = sphi 0, %s110
    %s128 = sphi 0, %s128
    %s130 = sphi 0, %s128
    %s131 = sphi 0, %s130
    %s145 = sphi 0, %s131
    %s149 = sphi 0, %s149
    %s151 = sphi 0, %s149
    %s152 = sphi 0, %s151
    %s166 = sphi 0, %s152
    %s170 = sphi 0, %s170
    %s172 = sphi 0, %s170
    %s173 = sphi 0, %s172
    %s187 = sphi 0, %s173
    %s191 = sphi 0, %s191
    %s193 = sphi 0, %s191
    %s194 = sphi 0, %s193
    %s208 = sphi 0, %s194
    %s212 = sphi 0, %s212
    %s214 = sphi 0, %s212
    %s215 = sphi 0, %s214
    %s229 = sphi 0, %s215
    %s233 = sphi 0, %s233
    %s235 = sphi 0, %s233
    %s236 = sphi 0, %s235
    %s250 = sphi 0, %s236
    %s254 = sphi 0, %s254
    %s256 = sphi 0, %s254
    %s257 = sphi 0, %s256
    %s271 = sphi 0, %s257
    %s277 = sphi 0, %s279
    %s280 = sphi 0, %s277
    %s281 = sphi 0, %s280
    %s297 = sphi 0, %s281
  $region4: #{pointnet_plusplus_forward.1} parent=0 // loop_header_branch
    %20 = sbr.rel (%p18) target = $region8
  $region5: #{pointnet_plusplus_forward.1} parent=0 // loop_body
    %s22 = ssub.s32 %s17, 1
    %s23 = ssub.s32 %s17, 2
    %s30 = sadd.s32 1, %s25
    %p31 = scmp.ge.s32.totalorder %s30, 3
    %s32 = scalar_select %p31, 0, %s30
    %s33 = sadd.s32 1, %s24
    %s34 = scalar_select %p31, %s33, %s24
    %p35 = scmp.ge.s32.totalorder %s34, 2
    %s36 = scalar_select %p35, 0, %s34
    %s37 = ssub.s32 %s24, %s36
    %s38 = ssub.s32 %s25, %s32
    %s39 = sor.u32 %s37, %s38
    %p40 = scmp.eq.s32.totalorder %s39, 0
    %s42 = sadd.s32 %s41, 1
    %s43 = scalar_select %p40, %s41, %s42
    %p46 = pneg %p40
    %p47 = scmp.eq.s32.totalorder %s17, 5
    %p48 = por %p46, %p47
    %p49 = scmp.ne.s32.totalorder %s41, %s44
    %p50 = scmp.eq.s32.totalorder %s17, 0
    %p51 = por %p49, %p50
    %p52 = scmp.ne.s32.totalorder %s41, %s44
    %p53 = scmp.eq.s32.totalorder %s22, 5
    %p54 = por %p52, %p53
    %p55 = scmp.ne.s32.totalorder %s44, %s45
    %p56 = scmp.eq.s32.totalorder %s22, 0
    %p57 = por %p55, %p56
    %p58 = scmp.ne.s32.totalorder %s44, %s45
    %p59 = scmp.eq.s32.totalorder %s23, 5
    %p60 = por %p58, %p59
    %p62 = scmp.ne.s32.totalorder %s45, %s61
    %p63 = scmp.eq.s32.totalorder %s23, 0
    %p64 = por %p62, %p63
    %s66 = sadd.s32 %s65, 1
    %p69 = scmp.eq.s32.totalorder %s17, 5
    %p70 = scmp.ne.s32.totalorder %s65, %s67
    %p71 = scmp.eq.s32.totalorder %s17, 0
    %p72 = por %p70, %p71
    %p73 = scmp.ne.s32.totalorder %s65, %s67
    %p74 = scmp.eq.s32.totalorder %s22, 5
    %p75 = por %p73, %p74
    %p76 = scmp.ne.s32.totalorder %s67, %s68
    %p77 = scmp.eq.s32.totalorder %s22, 0
    %p78 = por %p76, %p77
    %p79 = scmp.ne.s32.totalorder %s67, %s68
    %p80 = scmp.eq.s32.totalorder %s23, 5
    %p81 = por %p79, %p80
    %p83 = scmp.ne.s32.totalorder %s68, %s82
    %p84 = scmp.eq.s32.totalorder %s23, 0
    %p85 = por %p83, %p84
    %s87 = sadd.s32 %s86, 1
    %p90 = scmp.eq.s32.totalorder %s17, 5
    %p91 = scmp.ne.s32.totalorder %s86, %s88
    %p92 = scmp.eq.s32.totalorder %s17, 0
    %p93 = por %p91, %p92
    %p94 = scmp.ne.s32.totalorder %s86, %s88
    %p95 = scmp.eq.s32.totalorder %s22, 5
    %p96 = por %p94, %p95
    %p97 = scmp.ne.s32.totalorder %s88, %s89
    %p98 = scmp.eq.s32.totalorder %s22, 0
    %p99 = por %p97, %p98
    %p100 = scmp.ne.s32.totalorder %s88, %s89
    %p101 = scmp.eq.s32.totalorder %s23, 5
    %p102 = por %p100, %p101
    %p104 = scmp.ne.s32.totalorder %s89, %s103
    %p105 = scmp.eq.s32.totalorder %s23, 0
    %p106 = por %p104, %p105
    %s108 = sadd.s32 %s107, 1
    %p111 = scmp.eq.s32.totalorder %s17, 5
    %p112 = scmp.ne.s32.totalorder %s107, %s109
    %p113 = scmp.eq.s32.totalorder %s17, 0
    %p114 = por %p112, %p113
    %p115 = scmp.ne.s32.totalorder %s107, %s109
    %p116 = scmp.eq.s32.totalorder %s22, 5
    %p117 = por %p115, %p116
    %p118 = scmp.ne.s32.totalorder %s109, %s110
    %p119 = scmp.eq.s32.totalorder %s22, 0
    %p120 = por %p118, %p119
    %p121 = scmp.ne.s32.totalorder %s109, %s110
    %p122 = scmp.eq.s32.totalorder %s23, 5
    %p123 = por %p121, %p122
    %p125 = scmp.ne.s32.totalorder %s110, %s124
    %p126 = scmp.eq.s32.totalorder %s23, 0
    %p127 = por %p125, %p126
    %s129 = sadd.s32 %s128, 1
    %p132 = scmp.eq.s32.totalorder %s17, 5
    %p133 = scmp.ne.s32.totalorder %s128, %s130
    %p134 = scmp.eq.s32.totalorder %s17, 0
    %p135 = por %p133, %p134
    %p136 = scmp.ne.s32.totalorder %s128, %s130
    %p137 = scmp.eq.s32.totalorder %s22, 5
    %p138 = por %p136, %p137
    %p139 = scmp.ne.s32.totalorder %s130, %s131
    %p140 = scmp.eq.s32.totalorder %s22, 0
    %p141 = por %p139, %p140
    %p142 = scmp.ne.s32.totalorder %s130, %s131
    %p143 = scmp.eq.s32.totalorder %s23, 5
    %p144 = por %p142, %p143
    %p146 = scmp.ne.s32.totalorder %s131, %s145
    %p147 = scmp.eq.s32.totalorder %s23, 0
    %p148 = por %p146, %p147
    %s150 = sadd.s32 %s149, 1
    %p153 = scmp.eq.s32.totalorder %s17, 5
    %p154 = scmp.ne.s32.totalorder %s149, %s151
    %p155 = scmp.eq.s32.totalorder %s17, 0
    %p156 = por %p154, %p155
    %p157 = scmp.ne.s32.totalorder %s149, %s151
    %p158 = scmp.eq.s32.totalorder %s22, 5
    %p159 = por %p157, %p158
    %p160 = scmp.ne.s32.totalorder %s151, %s152
    %p161 = scmp.eq.s32.totalorder %s22, 0
    %p162 = por %p160, %p161
    %p163 = scmp.ne.s32.totalorder %s151, %s152
    %p164 = scmp.eq.s32.totalorder %s23, 5
    %p165 = por %p163, %p164
    %p167 = scmp.ne.s32.totalorder %s152, %s166
    %p168 = scmp.eq.s32.totalorder %s23, 0
    %p169 = por %p167, %p168
    %s171 = sadd.s32 %s170, 1
    %p174 = scmp.eq.s32.totalorder %s17, 5
    %p175 = scmp.ne.s32.totalorder %s170, %s172
    %p176 = scmp.eq.s32.totalorder %s17, 0
    %p177 = por %p175, %p176
    %p178 = scmp.ne.s32.totalorder %s170, %s172
    %p179 = scmp.eq.s32.totalorder %s22, 5
    %p180 = por %p178, %p179
    %p181 = scmp.ne.s32.totalorder %s172, %s173
    %p182 = scmp.eq.s32.totalorder %s22, 0
    %p183 = por %p181, %p182
    %p184 = scmp.ne.s32.totalorder %s172, %s173
    %p185 = scmp.eq.s32.totalorder %s23, 5
    %p186 = por %p184, %p185
    %p188 = scmp.ne.s32.totalorder %s173, %s187
    %p189 = scmp.eq.s32.totalorder %s23, 0
    %p190 = por %p188, %p189
    %s192 = sadd.s32 %s191, 1
    %p195 = scmp.eq.s32.totalorder %s17, 5
    %p196 = scmp.ne.s32.totalorder %s191, %s193
    %p197 = scmp.eq.s32.totalorder %s17, 0
    %p198 = por %p196, %p197
    %p199 = scmp.ne.s32.totalorder %s191, %s193
    %p200 = scmp.eq.s32.totalorder %s22, 5
    %p201 = por %p199, %p200
    %p202 = scmp.ne.s32.totalorder %s193, %s194
    %p203 = scmp.eq.s32.totalorder %s22, 0
    %p204 = por %p202, %p203
    %p205 = scmp.ne.s32.totalorder %s193, %s194
    %p206 = scmp.eq.s32.totalorder %s23, 5
    %p207 = por %p205, %p206
    %p209 = scmp.ne.s32.totalorder %s194, %s208
    %p210 = scmp.eq.s32.totalorder %s23, 0
    %p211 = por %p209, %p210
    %s213 = sadd.s32 %s212, 1
    %p216 = scmp.eq.s32.totalorder %s17, 5
    %p217 = scmp.ne.s32.totalorder %s212, %s214
    %p218 = scmp.eq.s32.totalorder %s17, 0
    %p219 = por %p217, %p218
    %p220 = scmp.ne.s32.totalorder %s212, %s214
    %p221 = scmp.eq.s32.totalorder %s22, 5
    %p222 = por %p220, %p221
    %p223 = scmp.ne.s32.totalorder %s214, %s215
    %p224 = scmp.eq.s32.totalorder %s22, 0
    %p225 = por %p223, %p224
    %p226 = scmp.ne.s32.totalorder %s214, %s215
    %p227 = scmp.eq.s32.totalorder %s23, 5
    %p228 = por %p226, %p227
    %p230 = scmp.ne.s32.totalorder %s215, %s229
    %p231 = scmp.eq.s32.totalorder %s23, 0
    %p232 = por %p230, %p231
    %s234 = sadd.s32 %s233, 1
    %p237 = scmp.eq.s32.totalorder %s17, 5
    %p238 = scmp.ne.s32.totalorder %s233, %s235
    %p239 = scmp.eq.s32.totalorder %s17, 0
    %p240 = por %p238, %p239
    %p241 = scmp.ne.s32.totalorder %s233, %s235
    %p242 = scmp.eq.s32.totalorder %s22, 5
    %p243 = por %p241, %p242
    %p244 = scmp.ne.s32.totalorder %s235, %s236
    %p245 = scmp.eq.s32.totalorder %s22, 0
    %p246 = por %p244, %p245
    %p247 = scmp.ne.s32.totalorder %s235, %s236
    %p248 = scmp.eq.s32.totalorder %s23, 5
    %p249 = por %p247, %p248
    %p251 = scmp.ne.s32.totalorder %s236, %s250
    %p252 = scmp.eq.s32.totalorder %s23, 0
    %p253 = por %p251, %p252
    %s255 = sadd.s32 %s254, 1
    %p258 = scmp.eq.s32.totalorder %s17, 5
    %p259 = scmp.ne.s32.totalorder %s254, %s256
    %p260 = scmp.eq.s32.totalorder %s17, 0
    %p261 = por %p259, %p260
    %p262 = scmp.ne.s32.totalorder %s254, %s256
    %p263 = scmp.eq.s32.totalorder %s22, 5
    %p264 = por %p262, %p263
    %p265 = scmp.ne.s32.totalorder %s256, %s257
    %p266 = scmp.eq.s32.totalorder %s22, 0
    %p267 = por %p265, %p266
    %p268 = scmp.ne.s32.totalorder %s256, %s257
    %p269 = scmp.eq.s32.totalorder %s23, 5
    %p270 = por %p268, %p269
    %p272 = scmp.ne.s32.totalorder %s257, %s271
    %p273 = scmp.eq.s32.totalorder %s23, 0
    %p274 = por %p272, %p273
    %s275 = ssub.s32 %s24, %s36
    %p276 = scmp.eq.s32.totalorder %s275, 0
    %s278 = sadd.s32 %s277, 1
    %s279 = scalar_select %p276, %s277, %s278
    %p282 = pneg %p276
    %p283 = scmp.eq.s32.totalorder %s17, 5
    %p284 = por %p282, %p283
    %p285 = scmp.ne.s32.totalorder %s277, %s280
    %p286 = scmp.eq.s32.totalorder %s17, 0
    %p287 = por %p285, %p286
    %p288 = scmp.ne.s32.totalorder %s277, %s280
    %p289 = scmp.eq.s32.totalorder %s22, 5
    %p290 = por %p288, %p289
    %p291 = scmp.ne.s32.totalorder %s280, %s281
    %p292 = scmp.eq.s32.totalorder %s22, 0
    %p293 = por %p291, %p292
    %p294 = scmp.ne.s32.totalorder %s280, %s281
    %p295 = scmp.eq.s32.totalorder %s23, 5
    %p296 = por %p294, %p295
    %p298 = scmp.ne.s32.totalorder %s281, %s297
    %p299 = scmp.eq.s32.totalorder %s23, 0
    %p300 = por %p298, %p299
    %p301 = scmp.le.s32.totalorder 1, %s17
    %p302 = scmp.lt.s32.totalorder %s17, 7
    %p303 = pnand %p301, %p302
    %p304 = pneg %p303
    // Predicated region
    $region9: #{pointnet_plusplus_forward.1} parent=5 // pred_check
      _
    $region10: #{pointnet_plusplus_forward.1} parent=5 // pred_check_branch
      %306 = sbr.rel (%p303) target = $region12
    $region11: #{pointnet_plusplus_forward.1} parent=5 // pred_region
      %s307 = ssub.s32 %s17, 1
      // Predicated region
      $region13: #{pointnet_plusplus_forward.1} parent=11 // pred_check
        %p308 = pneg %p78
      $region14: #{pointnet_plusplus_forward.1} parent=11 // pred_check_branch
        %310 = sbr.rel (%p308) target = $region16
      $region15: #{pointnet_plusplus_forward.1} parent=11 // pred_region
        _
      $region16: #{pointnet_plusplus_forward.1} parent=11 // pred_fallthru
        _
      // Predicated region
      $region17: #{pointnet_plusplus_forward.1} parent=11 // pred_check
        %p311 = pneg %p99
      $region18: #{pointnet_plusplus_forward.1} parent=11 // pred_check_branch
        %313 = sbr.rel (%p311) target = $region20
      $region19: #{pointnet_plusplus_forward.1} parent=11 // pred_region
        _
      $region20: #{pointnet_plusplus_forward.1} parent=11 // pred_fallthru
        _
      // Predicated region
      $region21: #{pointnet_plusplus_forward.1} parent=11 // pred_check
        %p314 = pneg %p120
      $region22: #{pointnet_plusplus_forward.1} parent=11 // pred_check_branch
        %316 = sbr.rel (%p314) target = $region24
      $region23: #{pointnet_plusplus_forward.1} parent=11 // pred_region
        _
      $region24: #{pointnet_plusplus_forward.1} parent=11 // pred_fallthru
        _
      // Predicated region
      $region25: #{pointnet_plusplus_forward.1} parent=11 // pred_check
        %p317 = pneg %p141
      $region26: #{pointnet_plusplus_forward.1} parent=11 // pred_check_branch
        %319 = sbr.rel (%p317) target = $region28
      $region27: #{pointnet_plusplus_forward.1} parent=11 // pred_region
        _
      $region28: #{pointnet_plusplus_forward.1} parent=11 // pred_fallthru
        _
      // Predicated region
      $region29: #{pointnet_plusplus_forward.1} parent=11 // pred_check
        %p320 = pneg %p162
      $region30: #{pointnet_plusplus_forward.1} parent=11 // pred_check_branch
        %322 = sbr.rel (%p320) target = $region32
      $region31: #{pointnet_plusplus_forward.1} parent=11 // pred_region
        _
      $region32: #{pointnet_plusplus_forward.1} parent=11 // pred_fallthru
        _
      // Predicated region
      $region33: #{pointnet_plusplus_forward.1} parent=11 // pred_check
        %p323 = pneg %p183
      $region34: #{pointnet_plusplus_forward.1} parent=11 // pred_check_branch
        %325 = sbr.rel (%p323) target = $region36
      $region35: #{pointnet_plusplus_forward.1} parent=11 // pred_region
        _
      $region36: #{pointnet_plusplus_forward.1} parent=11 // pred_fallthru
        _
      // Predicated region
      $region37: #{pointnet_plusplus_forward.1} parent=11 // pred_check
        %p326 = pneg %p204
      $region38: #{pointnet_plusplus_forward.1} parent=11 // pred_check_branch
        %328 = sbr.rel (%p326) target = $region40
      $region39: #{pointnet_plusplus_forward.1} parent=11 // pred_region
        _
      $region40: #{pointnet_plusplus_forward.1} parent=11 // pred_fallthru
        _
      // Predicated region
      $region41: #{pointnet_plusplus_forward.1} parent=11 // pred_check
        %p329 = pneg %p225
      $region42: #{pointnet_plusplus_forward.1} parent=11 // pred_check_branch
        %331 = sbr.rel (%p329) target = $region44
      $region43: #{pointnet_plusplus_forward.1} parent=11 // pred_region
        _
      $region44: #{pointnet_plusplus_forward.1} parent=11 // pred_fallthru
        _
      // Predicated region
      $region45: #{pointnet_plusplus_forward.1} parent=11 // pred_check
        %p332 = pneg %p246
      $region46: #{pointnet_plusplus_forward.1} parent=11 // pred_check_branch
        %334 = sbr.rel (%p332) target = $region48
      $region47: #{pointnet_plusplus_forward.1} parent=11 // pred_region
        _
      $region48: #{pointnet_plusplus_forward.1} parent=11 // pred_fallthru
        _
      // Predicated region
      $region49: #{pointnet_plusplus_forward.1} parent=11 // pred_check
        %p335 = pneg %p267
      $region50: #{pointnet_plusplus_forward.1} parent=11 // pred_check_branch
        %337 = sbr.rel (%p335) target = $region52
      $region51: #{pointnet_plusplus_forward.1} parent=11 // pred_region
        _
      $region52: #{pointnet_plusplus_forward.1} parent=11 // pred_fallthru
        _
    $region12: #{pointnet_plusplus_forward.1} parent=5 // pred_fallthru
      _
    %p338 = scmp.lt.s32.totalorder %s17, 6
    // Predicated region
    $region53: #{pointnet_plusplus_forward.1} parent=5 // pred_check
      %p339 = pneg %p338
    $region54: #{pointnet_plusplus_forward.1} parent=5 // pred_check_branch
      %341 = sbr.rel (%p339) target = $region56
    $region55: #{pointnet_plusplus_forward.1} parent=5 // pred_region
      // Predicated region
      $region57: #{pointnet_plusplus_forward.1} parent=55 // pred_check
        %p342 = pneg %p51
      $region58: #{pointnet_plusplus_forward.1} parent=55 // pred_check_branch
        %344 = sbr.rel (%p342) target = $region60
      $region59: #{pointnet_plusplus_forward.1} parent=55 // pred_region
        %p345 = scmp.lt.s32.totalorder %s24, 1
        %s346 = scalar_select %p345, %s24, 1
        %p347 = scmp.lt.s32.totalorder %s25, 2
        %s348 = scalar_select %p347, %s25, 2
        %s349 = smul.addr %s346, 3
        %s350 = sadd.s32 %s348, %s349
        %s351 = smul.addr %s350, 4
        %s352 = scalar_lea.vmem %s0, %s351
      $region60: #{pointnet_plusplus_forward.1} parent=55 // pred_fallthru
        _
    $region56: #{pointnet_plusplus_forward.1} parent=5 // pred_fallthru
      _
    %p353 = scmp.le.s32.totalorder 1, %s17
    %p354 = scmp.lt.s32.totalorder %s17, 7
    %p355 = pnand %p353, %p354
    %p356 = pneg %p355
    // Predicated region
    $region61: #{pointnet_plusplus_forward.1} parent=5 // pred_check
      _
    $region62: #{pointnet_plusplus_forward.1} parent=5 // pred_check_branch
      %358 = sbr.rel (%p355) target = $region64
    $region63: #{pointnet_plusplus_forward.1} parent=5 // pred_region
      %s359 = ssub.s32 %s17, 1
      %p360 = scmp.lt.s32.totalorder %s26, 1
      %s361 = scalar_select %p360, %s26, 1
      %p362 = scmp.lt.s32.totalorder %s27, 2
      %s363 = scalar_select %p362, %s27, 2
      %s364 = smul.addr %s361, 3
      %s365 = sadd.s32 %s363, %s364
      %s366 = smul.addr %s365, 4
      %s367 = scalar_lea.vmem %s0, %s366
      %p368 = pneg %p57
      %p369 = pneg %p54
      %p370 = pneg %p78
      %p371 = pneg %p75
      %p372 = pneg %p99
      %p373 = pneg %p96
      %p374 = pneg %p120
      %p375 = pneg %p117
      %p376 = pneg %p141
      %p377 = pneg %p138
      %p378 = pneg %p162
      %p379 = pneg %p159
      %p380 = pneg %p183
      %p381 = pneg %p180
      %p382 = pneg %p204
      %p383 = pneg %p201
      %p384 = pneg %p225
      %p385 = pneg %p222
      %p386 = pneg %p246
      %p387 = pneg %p243
      %p388 = pneg %p267
      %p389 = pneg %p264
      %p390 = pneg %p293
      %p391 = pneg %p290
      %p392 = scmp.lt.s32.totalorder %s26, 1
      %s393 = scalar_select %p392, %s26, 1
      %s394 = smul.addr %s393, 16
      %s395 = smul.addr %s394, 8
      %s396 = scalar_lea.vmem %s11, %s395
      %p397 = scmp.lt.s32.totalorder %s26, 1
      %s398 = scalar_select %p397, %s26, 1
      %p399 = scmp.lt.s32.totalorder %s27, 2
      %s400 = scalar_select %p399, %s27, 2
      %s401 = smul.addr %s398, 3
      %s402 = sadd.s32 %s400, %s401
      %s403 = smul.addr %s402, 4
      %s404 = scalar_lea.vmem %s0, %s403
      %p405 = scmp.lt.s32.totalorder %s26, 1
      %s406 = scalar_select %p405, %s26, 1
      %s407 = smul.addr %s406, 16
      %s408 = smul.addr %s407, 8
      %s409 = scalar_lea.vmem %s11, %s408
      %p411 = scmp.eq.s32.totalorder %s27, 0
      // Predicated region
      $region65: #{pointnet_plusplus_forward.1} parent=63 // pred_check
        %p412 = pneg %p411
      $region66: #{pointnet_plusplus_forward.1} parent=63 // pred_check_branch
        %414 = sbr.rel (%p412) target = $region68
      $region67: #{pointnet_plusplus_forward.1} parent=63 // pred_region
        %415 = vst [vmem:[#allocation2] sm:$0xff] -inf
        %416 = vst [vmem:[#allocation2 + $0x8] sm:$0xff] -inf
        %417 = vst [vmem:[#allocation2 + $0x10] sm:$0xff] -inf
        %418 = vst [vmem:[#allocation2 + $0x18] sm:$0xff] -inf
        %419 = vst [vmem:[#allocation2 + $0x20] sm:$0xff] -inf
        %420 = vst [vmem:[#allocation2 + $0x28] sm:$0xff] -inf
        %421 = vst [vmem:[#allocation2 + $0x30] sm:$0xff] -inf
        %422 = vst [vmem:[#allocation2 + $0x38] sm:$0xff] -inf
        %423 = vst [vmem:[#allocation2 + $0x40] sm:$0xff] -inf
        %424 = vst [vmem:[#allocation2 + $0x48] sm:$0xff] -inf
        %425 = vst [vmem:[#allocation2 + $0x50] sm:$0xff] -inf
        %426 = vst [vmem:[#allocation2 + $0x58] sm:$0xff] -inf
        %427 = vst [vmem:[#allocation2 + $0x60] sm:$0xff] -inf
        %428 = vst [vmem:[#allocation2 + $0x68] sm:$0xff] -inf
        %429 = vst [vmem:[#allocation2 + $0x70] sm:$0xff] -inf
        %430 = vst [vmem:[#allocation2 + $0x78] sm:$0xff] -inf
        %431 = vst [vmem:[#allocation2 + $0x80] sm:$0xff] -inf
        %432 = vst [vmem:[#allocation2 + $0x88] sm:$0xff] -inf
        %433 = vst [vmem:[#allocation2 + $0x90] sm:$0xff] -inf
        %434 = vst [vmem:[#allocation2 + $0x98] sm:$0xff] -inf
        %435 = vst [vmem:[#allocation2 + $0xa0] sm:$0xff] -inf
        %436 = vst [vmem:[#allocation2 + $0xa8] sm:$0xff] -inf
        %437 = vst [vmem:[#allocation2 + $0xb0] sm:$0xff] -inf
        %438 = vst [vmem:[#allocation2 + $0xb8] sm:$0xff] -inf
        %439 = vst [vmem:[#allocation2 + $0xc0] sm:$0xff] -inf
        %440 = vst [vmem:[#allocation2 + $0xc8] sm:$0xff] -inf
        %441 = vst [vmem:[#allocation2 + $0xd0] sm:$0xff] -inf
        %442 = vst [vmem:[#allocation2 + $0xd8] sm:$0xff] -inf
        %443 = vst [vmem:[#allocation2 + $0xe0] sm:$0xff] -inf
        %444 = vst [vmem:[#allocation2 + $0xe8] sm:$0xff] -inf
        %445 = vst [vmem:[#allocation2 + $0xf0] sm:$0xff] -inf
        %446 = vst [vmem:[#allocation2 + $0xf8] sm:$0xff] -inf
      $region68: #{pointnet_plusplus_forward.1} parent=63 // pred_fallthru
        _
      %v447 = vld [vmem:[%s404] sm:$0x7]
      %v448 = vld [vmem:[%s1] sm:$0xff]
      %v449 = vld [vmem:[%s1 + $0x8] sm:$0xff]
      %v450 = vld [vmem:[%s1 + $0x10] sm:$0xff]
      %v451 = vld [vmem:[%s1 + $0x18] sm:$0xff]
      %v452 = vld [vmem:[%s1 + $0x20] sm:$0xff]
      %v453 = vld [vmem:[%s1 + $0x28] sm:$0xff]
      %v454 = vld [vmem:[%s1 + $0x30] sm:$0xff]
      %v455 = vld [vmem:[%s1 + $0x38] sm:$0xff]
      %457 = vset.pattern.permute.xlu0 0
      %458 = vperm.xlu0 %457, %v448
      %v459 = vpop.permute.xlu0 %458
      %462 = vset.pattern.permute.xlu0 0
      %463 = vperm.xlu0 %462, %v449
      %v464 = vpop.permute.xlu0 %463
      %467 = vset.pattern.permute.xlu0 0
      %468 = vperm.xlu0 %467, %v450
      %v469 = vpop.permute.xlu0 %468
      %472 = vset.pattern.permute.xlu0 0
      %473 = vperm.xlu0 %472, %v451
      %v474 = vpop.permute.xlu0 %473
      %477 = vset.pattern.permute.xlu0 0
      %478 = vperm.xlu0 %477, %v452
      %v479 = vpop.permute.xlu0 %478
      %482 = vset.pattern.permute.xlu0 0
      %483 = vperm.xlu0 %482, %v453
      %v484 = vpop.permute.xlu0 %483
      %487 = vset.pattern.permute.xlu0 0
      %488 = vperm.xlu0 %487, %v454
      %v489 = vpop.permute.xlu0 %488
      %492 = vset.pattern.permute.xlu0 0
      %493 = vperm.xlu0 %492, %v455
      %v494 = vpop.permute.xlu0 %493
      %v496 = vlaneseq
      %v497 = vshrl.u32 %v496, 7
      %v498 = vsub.s32 0, %v497
      %v499 = vrot.slane %v447, %v498
      %v500 = vmul.f32 %v459, %v499
      %v501 = vmul.f32 %v464, %v499
      %v502 = vmul.f32 %v469, %v499
      %v503 = vmul.f32 %v474, %v499
      %v504 = vmul.f32 %v479, %v499
      %v505 = vmul.f32 %v484, %v499
      %v506 = vmul.f32 %v489, %v499
      %v507 = vmul.f32 %v494, %v499
      %508 = vset.pattern.permute.xlu0 1
      %509 = vperm.xlu0 %508, %v448
      %v510 = vpop.permute.xlu0 %509
      %512 = vset.pattern.permute.xlu0 1
      %513 = vperm.xlu0 %512, %v449
      %v514 = vpop.permute.xlu0 %513
      %516 = vset.pattern.permute.xlu0 1
      %517 = vperm.xlu0 %516, %v450
      %v518 = vpop.permute.xlu0 %517
      %520 = vset.pattern.permute.xlu0 1
      %521 = vperm.xlu0 %520, %v451
      %v522 = vpop.permute.xlu0 %521
      %524 = vset.pattern.permute.xlu0 1
      %525 = vperm.xlu0 %524, %v452
      %v526 = vpop.permute.xlu0 %525
      %528 = vset.pattern.permute.xlu0 1
      %529 = vperm.xlu0 %528, %v453
      %v530 = vpop.permute.xlu0 %529
      %532 = vset.pattern.permute.xlu0 1
      %533 = vperm.xlu0 %532, %v454
      %v534 = vpop.permute.xlu0 %533
      %536 = vset.pattern.permute.xlu0 1
      %537 = vperm.xlu0 %536, %v455
      %v538 = vpop.permute.xlu0 %537
      %v540 = vlaneseq
      %v541 = vshrl.u32 %v540, 7
      %v542 = vsub.s32 1, %v541
      %v543 = vrot.slane %v447, %v542
      %v544 = vmul.f32 %v510, %v543
      %v545 = vmul.f32 %v514, %v543
      %v546 = vmul.f32 %v518, %v543
      %v547 = vmul.f32 %v522, %v543
      %v548 = vmul.f32 %v526, %v543
      %v549 = vmul.f32 %v530, %v543
      %v550 = vmul.f32 %v534, %v543
      %v551 = vmul.f32 %v538, %v543
      %v552 = vadd.f32 %v500, %v544
      %v553 = vadd.f32 %v501, %v545
      %v554 = vadd.f32 %v502, %v546
      %v555 = vadd.f32 %v503, %v547
      %v556 = vadd.f32 %v504, %v548
      %v557 = vadd.f32 %v505, %v549
      %v558 = vadd.f32 %v506, %v550
      %v559 = vadd.f32 %v507, %v551
      %560 = vset.pattern.permute.xlu0 2
      %561 = vperm.xlu0 %560, %v448
      %v562 = vpop.permute.xlu0 %561
      %564 = vset.pattern.permute.xlu0 2
      %565 = vperm.xlu0 %564, %v449
      %v566 = vpop.permute.xlu0 %565
      %568 = vset.pattern.permute.xlu0 2
      %569 = vperm.xlu0 %568, %v450
      %v570 = vpop.permute.xlu0 %569
      %572 = vset.pattern.permute.xlu0 2
      %573 = vperm.xlu0 %572, %v451
      %v574 = vpop.permute.xlu0 %573
      %576 = vset.pattern.permute.xlu0 2
      %577 = vperm.xlu0 %576, %v452
      %v578 = vpop.permute.xlu0 %577
      %580 = vset.pattern.permute.xlu0 2
      %581 = vperm.xlu0 %580, %v453
      %v582 = vpop.permute.xlu0 %581
      %584 = vset.pattern.permute.xlu0 2
      %585 = vperm.xlu0 %584, %v454
      %v586 = vpop.permute.xlu0 %585
      %588 = vset.pattern.permute.xlu0 2
      %589 = vperm.xlu0 %588, %v455
      %v590 = vpop.permute.xlu0 %589
      %v592 = vlaneseq
      %v593 = vshrl.u32 %v592, 7
      %v594 = vsub.s32 2, %v593
      %v595 = vrot.slane %v447, %v594
      %v596 = vmul.f32 %v562, %v595
      %v597 = vmul.f32 %v566, %v595
      %v598 = vmul.f32 %v570, %v595
      %v599 = vmul.f32 %v574, %v595
      %v600 = vmul.f32 %v578, %v595
      %v601 = vmul.f32 %v582, %v595
      %v602 = vmul.f32 %v586, %v595
      %v603 = vmul.f32 %v590, %v595
      %v604 = vadd.f32 %v552, %v596
      %v605 = vadd.f32 %v553, %v597
      %v606 = vadd.f32 %v554, %v598
      %v607 = vadd.f32 %v555, %v599
      %v608 = vadd.f32 %v556, %v600
      %v609 = vadd.f32 %v557, %v601
      %v610 = vadd.f32 %v558, %v602
      %v611 = vadd.f32 %v559, %v603
      %v612 = vld [vmem:[%s2] sm:$0xff]
      %v613 = vld [vmem:[%s2 + $0x8] sm:$0xff]
      %v614 = vld [vmem:[%s2 + $0x10] sm:$0xff]
      %v615 = vld [vmem:[%s2 + $0x18] sm:$0xff]
      %v616 = vld [vmem:[%s2 + $0x20] sm:$0xff]
      %v617 = vld [vmem:[%s2 + $0x28] sm:$0xff]
      %v618 = vld [vmem:[%s2 + $0x30] sm:$0xff]
      %v619 = vld [vmem:[%s2 + $0x38] sm:$0xff]
      %621 = vset.pattern.permute.xlu0 0
      %622 = vperm.xlu0 %621, %v612
      %v623 = vpop.permute.xlu0 %622
      %626 = vset.pattern.permute.xlu0 0
      %627 = vperm.xlu0 %626, %v613
      %v628 = vpop.permute.xlu0 %627
      %631 = vset.pattern.permute.xlu0 0
      %632 = vperm.xlu0 %631, %v614
      %v633 = vpop.permute.xlu0 %632
      %636 = vset.pattern.permute.xlu0 0
      %637 = vperm.xlu0 %636, %v615
      %v638 = vpop.permute.xlu0 %637
      %641 = vset.pattern.permute.xlu0 0
      %642 = vperm.xlu0 %641, %v616
      %v643 = vpop.permute.xlu0 %642
      %646 = vset.pattern.permute.xlu0 0
      %647 = vperm.xlu0 %646, %v617
      %v648 = vpop.permute.xlu0 %647
      %651 = vset.pattern.permute.xlu0 0
      %652 = vperm.xlu0 %651, %v618
      %v653 = vpop.permute.xlu0 %652
      %656 = vset.pattern.permute.xlu0 0
      %657 = vperm.xlu0 %656, %v619
      %v658 = vpop.permute.xlu0 %657
      %v660 = vadd.f32 %v604, %v623
      %v661 = vadd.f32 %v605, %v628
      %v662 = vadd.f32 %v606, %v633
      %v663 = vadd.f32 %v607, %v638
      %v664 = vadd.f32 %v608, %v643
      %v665 = vadd.f32 %v609, %v648
      %v666 = vadd.f32 %v610, %v653
      %v667 = vadd.f32 %v611, %v658
      %v668 = vmax.f32 %v660, 0.0
      %v669 = vmax.f32 %v661, 0.0
      %v670 = vmax.f32 %v662, 0.0
      %v671 = vmax.f32 %v663, 0.0
      %v672 = vmax.f32 %v664, 0.0
      %v673 = vmax.f32 %v665, 0.0
      %v674 = vmax.f32 %v666, 0.0
      %v675 = vmax.f32 %v667, 0.0
      %v676 = vpack.c.bf16 %v669, %v668
      %v677 = vpack.c.bf16 %v671, %v670
      %v678 = vpack.c.bf16 %v673, %v672
      %v679 = vpack.c.bf16 %v675, %v674
      %v680 = vld [vmem:[%s3] sm:$0xf]
      %v681 = vld [vmem:[%s3 + $0x4] sm:$0xf]
      %v682 = vld [vmem:[%s3 + $0x8] sm:$0xf]
      %v683 = vld [vmem:[%s3 + $0xc] sm:$0xf]
      %v684 = vld [vmem:[%s3 + $0x10] sm:$0xf]
      %v685 = vld [vmem:[%s3 + $0x14] sm:$0xf]
      %v686 = vld [vmem:[%s3 + $0x18] sm:$0xf]
      %v687 = vld [vmem:[%s3 + $0x1c] sm:$0xf]
      %v688 = vld [vmem:[%s3 + $0x20] sm:$0xf]
      %v689 = vld [vmem:[%s3 + $0x24] sm:$0xf]
      %v690 = vld [vmem:[%s3 + $0x28] sm:$0xf]
      %v691 = vld [vmem:[%s3 + $0x2c] sm:$0xf]
      %v692 = vld [vmem:[%s3 + $0x30] sm:$0xf]
      %v693 = vld [vmem:[%s3 + $0x34] sm:$0xf]
      %v694 = vld [vmem:[%s3 + $0x38] sm:$0xf]
      %v695 = vld [vmem:[%s3 + $0x3c] sm:$0xf]
      %v696 = vld [vmem:[%s4] sm:$0xff]
      %v697 = vld [vmem:[%s4 + $0x8] sm:$0xff]
      %v698 = vld [vmem:[%s4 + $0x10] sm:$0xff]
      %v699 = vld [vmem:[%s4 + $0x18] sm:$0xff]
      %v700 = vld [vmem:[%s4 + $0x20] sm:$0xff]
      %v701 = vld [vmem:[%s4 + $0x28] sm:$0xff]
      %v702 = vld [vmem:[%s4 + $0x30] sm:$0xff]
      %v703 = vld [vmem:[%s4 + $0x38] sm:$0xff]
      %v704 = vld [vmem:[%s4 + $0x40] sm:$0xff]
      %v705 = vld [vmem:[%s4 + $0x48] sm:$0xff]
      %v706 = vld [vmem:[%s4 + $0x50] sm:$0xff]
      %v707 = vld [vmem:[%s4 + $0x58] sm:$0xff]
      %v708 = vld [vmem:[%s4 + $0x60] sm:$0xff]
      %v709 = vld [vmem:[%s4 + $0x68] sm:$0xff]
      %v710 = vld [vmem:[%s4 + $0x70] sm:$0xff]
      %v711 = vld [vmem:[%s4 + $0x78] sm:$0xff]
      %713 = vset.pattern.permute.xlu0 0
      %714 = vperm.xlu0 %713, %v696
      %v715 = vpop.permute.xlu0 %714
      %718 = vset.pattern.permute.xlu0 0
      %719 = vperm.xlu0 %718, %v697
      %v720 = vpop.permute.xlu0 %719
      %723 = vset.pattern.permute.xlu0 0
      %724 = vperm.xlu0 %723, %v698
      %v725 = vpop.permute.xlu0 %724
      %728 = vset.pattern.permute.xlu0 0
      %729 = vperm.xlu0 %728, %v699
      %v730 = vpop.permute.xlu0 %729
      %733 = vset.pattern.permute.xlu0 0
      %734 = vperm.xlu0 %733, %v700
      %v735 = vpop.permute.xlu0 %734
      %738 = vset.pattern.permute.xlu0 0
      %739 = vperm.xlu0 %738, %v701
      %v740 = vpop.permute.xlu0 %739
      %743 = vset.pattern.permute.xlu0 0
      %744 = vperm.xlu0 %743, %v702
      %v745 = vpop.permute.xlu0 %744
      %748 = vset.pattern.permute.xlu0 0
      %749 = vperm.xlu0 %748, %v703
      %v750 = vpop.permute.xlu0 %749
      %753 = vset.pattern.permute.xlu0 0
      %754 = vperm.xlu0 %753, %v704
      %v755 = vpop.permute.xlu0 %754
      %758 = vset.pattern.permute.xlu0 0
      %759 = vperm.xlu0 %758, %v705
      %v760 = vpop.permute.xlu0 %759
      %763 = vset.pattern.permute.xlu0 0
      %764 = vperm.xlu0 %763, %v706
      %v765 = vpop.permute.xlu0 %764
      %768 = vset.pattern.permute.xlu0 0
      %769 = vperm.xlu0 %768, %v707
      %v770 = vpop.permute.xlu0 %769
      %773 = vset.pattern.permute.xlu0 0
      %774 = vperm.xlu0 %773, %v708
      %v775 = vpop.permute.xlu0 %774
      %778 = vset.pattern.permute.xlu0 0
      %779 = vperm.xlu0 %778, %v709
      %v780 = vpop.permute.xlu0 %779
      %783 = vset.pattern.permute.xlu0 0
      %784 = vperm.xlu0 %783, %v710
      %v785 = vpop.permute.xlu0 %784
      %788 = vset.pattern.permute.xlu0 0
      %789 = vperm.xlu0 %788, %v711
      %v790 = vpop.permute.xlu0 %789
      %v808 = vunpack.c.l.b16 %v680
      %v809 = vunpack.c.l.b16 %v681
      %v810 = vunpack.c.l.b16 %v682
      %v811 = vunpack.c.l.b16 %v683
      %v812 = vunpack.c.l.b16 %v684
      %v813 = vunpack.c.l.b16 %v685
      %v814 = vunpack.c.l.b16 %v686
      %v815 = vunpack.c.l.b16 %v687
      %v816 = vunpack.c.l.b16 %v688
      %v817 = vunpack.c.l.b16 %v689
      %v818 = vunpack.c.l.b16 %v690
      %v819 = vunpack.c.l.b16 %v691
      %v820 = vunpack.c.l.b16 %v692
      %v821 = vunpack.c.l.b16 %v693
      %v822 = vunpack.c.l.b16 %v694
      %v823 = vunpack.c.l.b16 %v695
      %v824 = vpack.c.b16 %v809, %v808
      %v825 = vpack.c.b16 %v811, %v810
      %v826 = vpack.c.b16 %v813, %v812
      %v827 = vpack.c.b16 %v815, %v814
      %v828 = vpack.c.b16 %v817, %v816
      %v829 = vpack.c.b16 %v819, %v818
      %v830 = vpack.c.b16 %v821, %v820
      %v831 = vpack.c.b16 %v823, %v822
      %vm832 = vcmask 523264
      %v834 = vsel %vm832, %v824, 0
      %v837 = vsel %vm832, %v825, 0
      %v840 = vsel %vm832, %v826, 0
      %v843 = vsel %vm832, %v827, 0
      %v846 = vsel %vm832, %v828, 0
      %v849 = vsel %vm832, %v829, 0
      %v852 = vsel %vm832, %v830, 0
      %v855 = vsel %vm832, %v831, 0
      %857 = vmatprep.subr.bf16.mxu0 0
      %858 = vmatpush1.bf16.msra.mxu0 %v676
      %859 = vmatprep.subr.bf16.mxu0 0
      %860 = vmatpush1.bf16.msra.mxu0 %v677
      %861 = vmatprep.subr.bf16.mxu0 0
      %862 = vmatpush1.bf16.msra.mxu0 %v678
      %863 = vmatprep.subr.bf16.mxu0 0
      %864 = vmatpush1.bf16.msra.mxu0 %v679
      %865 = vmatprep.subr.bf16.mxu0 0
      %866 = vmatpush1.bf16.msra.mxu0 0
      %867 = vmatprep.subr.bf16.mxu0 0
      %868 = vmatpush1.bf16.msra.mxu0 0
      %869 = vmatprep.subr.bf16.mxu0 0
      %870 = vmatpush1.bf16.msra.mxu0 0
      %871 = vmatprep.subr.bf16.mxu0 0
      %872 = vmatpush1.bf16.msra.mxu0 0
      %873 = vmatprep.subr.bf16.mxu0 0
      %874 = vmatpush1.bf16.msra.mxu0 0
      %875 = vmatprep.subr.bf16.mxu0 0
      %876 = vmatpush1.bf16.msra.mxu0 0
      %877 = vmatprep.subr.bf16.mxu0 0
      %878 = vmatpush1.bf16.msra.mxu0 0
      %879 = vmatprep.subr.bf16.mxu0 0
      %880 = vmatpush1.bf16.msra.mxu0 0
      %881 = vmatprep.subr.bf16.mxu0 0
      %882 = vmatpush1.bf16.msra.mxu0 0
      %883 = vmatprep.subr.bf16.mxu0 0
      %884 = vmatpush1.bf16.msra.mxu0 0
      %885 = vmatprep.subr.bf16.mxu0 0
      %886 = vmatpush1.bf16.msra.mxu0 0
      %887 = vmatprep.subr.bf16.mxu0 0
      %888 = vmatpush1.bf16.msra.mxu0 0
      %889 = vmatprep.mubr.bf16.mxu0 0
      %890 = vmatmul.mubr.bf16.gmra.mrb[0].mxu0 %v834
      %v891 = vpop.f32.mrb[0].mxu0
      %v892 = vadd.f32 %v715, %v891
      %v893 = vpop.f32.mrb[0].mxu0
      %v894 = vpop.f32.mrb[0].mxu0
      %v895 = vadd.f32 %v720, %v894
      %v896 = vpop.f32.mrb[0].mxu0
      %897 = vmatprep.mubr.bf16.mxu0 0
      %898 = vmatmul.mubr.bf16.gmra.mrb[0].mxu0 %v837
      %v899 = vpop.f32.mrb[0].mxu0
      %v900 = vadd.f32 %v725, %v899
      %v901 = vpop.f32.mrb[0].mxu0
      %v902 = vpop.f32.mrb[0].mxu0
      %v903 = vadd.f32 %v730, %v902
      %v904 = vpop.f32.mrb[0].mxu0
      %905 = vmatprep.mubr.bf16.mxu0 0
      %906 = vmatmul.mubr.bf16.gmra.mrb[0].mxu0 %v840
      %v907 = vpop.f32.mrb[0].mxu0
      %v908 = vadd.f32 %v735, %v907
      %v909 = vpop.f32.mrb[0].mxu0
      %v910 = vpop.f32.mrb[0].mxu0
      %v911 = vadd.f32 %v740, %v910
      %v912 = vpop.f32.mrb[0].mxu0
      %913 = vmatprep.mubr.bf16.mxu0 0
      %914 = vmatmul.mubr.bf16.gmra.mrb[0].mxu0 %v843
      %v915 = vpop.f32.mrb[0].mxu0
      %v916 = vadd.f32 %v745, %v915
      %v917 = vpop.f32.mrb[0].mxu0
      %v918 = vpop.f32.mrb[0].mxu0
      %v919 = vadd.f32 %v750, %v918
      %v920 = vpop.f32.mrb[0].mxu0
      %921 = vmatprep.mubr.bf16.mxu0 0
      %922 = vmatmul.mubr.bf16.gmra.mrb[0].mxu0 %v846
      %v923 = vpop.f32.mrb[0].mxu0
      %v924 = vadd.f32 %v755, %v923
      %v925 = vpop.f32.mrb[0].mxu0
      %v926 = vpop.f32.mrb[0].mxu0
      %v927 = vadd.f32 %v760, %v926
      %v928 = vpop.f32.mrb[0].mxu0
      %929 = vmatprep.mubr.bf16.mxu0 0
      %930 = vmatmul.mubr.bf16.gmra.mrb[0].mxu0 %v849
      %v931 = vpop.f32.mrb[0].mxu0
      %v932 = vadd.f32 %v765, %v931
      %v933 = vpop.f32.mrb[0].mxu0
      %v934 = vpop.f32.mrb[0].mxu0
      %v935 = vadd.f32 %v770, %v934
      %v936 = vpop.f32.mrb[0].mxu0
      %937 = vmatprep.mubr.bf16.mxu0 0
      %938 = vmatmul.mubr.bf16.gmra.mrb[0].mxu0 %v852
      %v939 = vpop.f32.mrb[0].mxu0
      %v940 = vadd.f32 %v775, %v939
      %v941 = vpop.f32.mrb[0].mxu0
      %v942 = vpop.f32.mrb[0].mxu0
      %v943 = vadd.f32 %v780, %v942
      %v944 = vpop.f32.mrb[0].mxu0
      %945 = vmatprep.mubr.bf16.mxu0 0
      %946 = vmatmul.mubr.bf16.gmra.mrb[0].mxu0 %v855
      %v947 = vpop.f32.mrb[0].mxu0
      %v948 = vadd.f32 %v785, %v947
      %v949 = vpop.f32.mrb[0].mxu0
      %v950 = vpop.f32.mrb[0].mxu0
      %v951 = vadd.f32 %v790, %v950
      %v952 = vpop.f32.mrb[0].mxu0
      %953 = vdwg.mxu0
      %v954 = vmax.f32 %v892, 0.0
      %v955 = vmax.f32 %v895, 0.0
      %v956 = vmax.f32 %v900, 0.0
      %v957 = vmax.f32 %v903, 0.0
      %v958 = vmax.f32 %v908, 0.0
      %v959 = vmax.f32 %v911, 0.0
      %v960 = vmax.f32 %v916, 0.0
      %v961 = vmax.f32 %v919, 0.0
      %v962 = vmax.f32 %v924, 0.0
      %v963 = vmax.f32 %v927, 0.0
      %v964 = vmax.f32 %v932, 0.0
      %v965 = vmax.f32 %v935, 0.0
      %v966 = vmax.f32 %v940, 0.0
      %v967 = vmax.f32 %v943, 0.0
      %v968 = vmax.f32 %v948, 0.0
      %v969 = vmax.f32 %v951, 0.0
      %v970 = vpack.c.bf16 %v955, %v954
      %v971 = vpack.c.bf16 %v957, %v956
      %v972 = vpack.c.bf16 %v959, %v958
      %v973 = vpack.c.bf16 %v961, %v960
      %v974 = vpack.c.bf16 %v963, %v962
      %v975 = vpack.c.bf16 %v965, %v964
      %v976 = vpack.c.bf16 %v967, %v966
      %v977 = vpack.c.bf16 %v969, %v968
      %v978 = vld [vmem:[%s5] sm:$0xf]
      %v979 = vld [vmem:[%s5 + $0x4] sm:$0xf]
      %v980 = vld [vmem:[%s5 + $0x8] sm:$0xf]
      %v981 = vld [vmem:[%s5 + $0xc] sm:$0xf]
      %v982 = vld [vmem:[%s5 + $0x10] sm:$0xf]
      %v983 = vld [vmem:[%s5 + $0x14] sm:$0xf]
      %v984 = vld [vmem:[%s5 + $0x18] sm:$0xf]
      %v985 = vld [vmem:[%s5 + $0x1c] sm:$0xf]
      %v986 = vld [vmem:[%s5 + $0x20] sm:$0xf]
      %v987 = vld [vmem:[%s5 + $0x24] sm:$0xf]
      %v988 = vld [vmem:[%s5 + $0x28] sm:$0xf]
      %v989 = vld [vmem:[%s5 + $0x2c] sm:$0xf]
      %v990 = vld [vmem:[%s5 + $0x30] sm:$0xf]
      %v991 = vld [vmem:[%s5 + $0x34] sm:$0xf]
      %v992 = vld [vmem:[%s5 + $0x38] sm:$0xf]
      %v993 = vld [vmem:[%s5 + $0x3c] sm:$0xf]
      %v994 = vld [vmem:[%s5 + $0x40] sm:$0xf]
      %v995 = vld [vmem:[%s5 + $0x44] sm:$0xf]
      %v996 = vld [vmem:[%s5 + $0x48] sm:$0xf]
      %v997 = vld [vmem:[%s5 + $0x4c] sm:$0xf]
      %v998 = vld [vmem:[%s5 + $0x50] sm:$0xf]
      %v999 = vld [vmem:[%s5 + $0x54] sm:$0xf]
      %v1000 = vld [vmem:[%s5 + $0x58] sm:$0xf]
      %v1001 = vld [vmem:[%s5 + $0x5c] sm:$0xf]
      %v1002 = vld [vmem:[%s5 + $0x60] sm:$0xf]
      %v1003 = vld [vmem:[%s5 + $0x64] sm:$0xf]
      %v1004 = vld [vmem:[%s5 + $0x68] sm:$0xf]
      %v1005 = vld [vmem:[%s5 + $0x6c] sm:$0xf]
      %v1006 = vld [vmem:[%s5 + $0x70] sm:$0xf]
      %v1007 = vld [vmem:[%s5 + $0x74] sm:$0xf]
      %v1008 = vld [vmem:[%s5 + $0x78] sm:$0xf]
      %v1009 = vld [vmem:[%s5 + $0x7c] sm:$0xf]
      %v1042 = vunpack.c.l.b16 %v978
      %v1043 = vunpack.c.l.b16 %v979
      %v1044 = vunpack.c.l.b16 %v980
      %v1045 = vunpack.c.l.b16 %v981
      %v1046 = vunpack.c.l.b16 %v982
      %v1047 = vunpack.c.l.b16 %v983
      %v1048 = vunpack.c.l.b16 %v984
      %v1049 = vunpack.c.l.b16 %v985
      %v1050 = vunpack.c.l.b16 %v986
      %v1051 = vunpack.c.l.b16 %v987
      %v1052 = vunpack.c.l.b16 %v988
      %v1053 = vunpack.c.l.b16 %v989
      %v1054 = vunpack.c.l.b16 %v990
      %v1055 = vunpack.c.l.b16 %v991
      %v1056 = vunpack.c.l.b16 %v992
      %v1057 = vunpack.c.l.b16 %v993
      %v1058 = vunpack.c.l.b16 %v994
      %v1059 = vunpack.c.l.b16 %v995
      %v1060 = vunpack.c.l.b16 %v996
      %v1061 = vunpack.c.l.b16 %v997
      %v1062 = vunpack.c.l.b16 %v998
      %v1063 = vunpack.c.l.b16 %v999
      %v1064 = vunpack.c.l.b16 %v1000
      %v1065 = vunpack.c.l.b16 %v1001
      %v1066 = vunpack.c.l.b16 %v1002
      %v1067 = vunpack.c.l.b16 %v1003
      %v1068 = vunpack.c.l.b16 %v1004
      %v1069 = vunpack.c.l.b16 %v1005
      %v1070 = vunpack.c.l.b16 %v1006
      %v1071 = vunpack.c.l.b16 %v1007
      %v1072 = vunpack.c.l.b16 %v1008
      %v1073 = vunpack.c.l.b16 %v1009
      %v1074 = vpack.c.b16 %v1043, %v1042
      %v1075 = vpack.c.b16 %v1045, %v1044
      %v1076 = vpack.c.b16 %v1047, %v1046
      %v1077 = vpack.c.b16 %v1049, %v1048
      %v1078 = vpack.c.b16 %v1051, %v1050
      %v1079 = vpack.c.b16 %v1053, %v1052
      %v1080 = vpack.c.b16 %v1055, %v1054
      %v1081 = vpack.c.b16 %v1057, %v1056
      %v1082 = vpack.c.b16 %v1059, %v1058
      %v1083 = vpack.c.b16 %v1061, %v1060
      %v1084 = vpack.c.b16 %v1063, %v1062
      %v1085 = vpack.c.b16 %v1065, %v1064
      %v1086 = vpack.c.b16 %v1067, %v1066
      %v1087 = vpack.c.b16 %v1069, %v1068
      %v1088 = vpack.c.b16 %v1071, %v1070
      %v1089 = vpack.c.b16 %v1073, %v1072
      %1106 = vmatprep.subr.bf16.mxu0 0
      %1107 = vmatpush1.bf16.msra.mxu0 %v970
      %1108 = vmatprep.subr.bf16.mxu0 0
      %1109 = vmatpush1.bf16.msra.mxu0 %v971
      %1110 = vmatprep.subr.bf16.mxu0 0
      %1111 = vmatpush1.bf16.msra.mxu0 %v972
      %1112 = vmatprep.subr.bf16.mxu0 0
      %1113 = vmatpush1.bf16.msra.mxu0 %v973
      %1114 = vmatprep.subr.bf16.mxu0 0
      %1115 = vmatpush1.bf16.msra.mxu0 %v974
      %1116 = vmatprep.subr.bf16.mxu0 0
      %1117 = vmatpush1.bf16.msra.mxu0 %v975
      %1118 = vmatprep.subr.bf16.mxu0 0
      %1119 = vmatpush1.bf16.msra.mxu0 %v976
      %1120 = vmatprep.subr.bf16.mxu0 0
      %1121 = vmatpush1.bf16.msra.mxu0 %v977
      %1122 = vmatprep.subr.bf16.mxu0 0
      %1123 = vmatpush1.bf16.msra.mxu0 0
      %1124 = vmatprep.subr.bf16.mxu0 0
      %1125 = vmatpush1.bf16.msra.mxu0 0
      %1126 = vmatprep.subr.bf16.mxu0 0
      %1127 = vmatpush1.bf16.msra.mxu0 0
      %1128 = vmatprep.subr.bf16.mxu0 0
      %1129 = vmatpush1.bf16.msra.mxu0 0
      %1130 = vmatprep.subr.bf16.mxu0 0
      %1131 = vmatpush1.bf16.msra.mxu0 0
      %1132 = vmatprep.subr.bf16.mxu0 0
      %1133 = vmatpush1.bf16.msra.mxu0 0
      %1134 = vmatprep.subr.bf16.mxu0 0
      %1135 = vmatpush1.bf16.msra.mxu0 0
      %1136 = vmatprep.subr.bf16.mxu0 0
      %1137 = vmatpush1.bf16.msra.mxu0 0
      %1138 = vmatprep.mubr.bf16.mxu0 0
      %1139 = vmatmul.mubr.bf16.gmra.mrb[0].mxu0 %v1074
      %v1140 = vpop.f32.mrb[0].mxu0
      %v1141 = vadd.f32 0.0, %v1140
      %v1142 = vpop.f32.mrb[0].mxu0
      %v1143 = vpop.f32.mrb[0].mxu0
      %v1144 = vadd.f32 0.0, %v1143
      %v1145 = vpop.f32.mrb[0].mxu0
      %1146 = vmatprep.mubr.bf16.mxu0 0
      %1147 = vmatmul.mubr.bf16.gmra.mrb[0].mxu0 %v1075
      %v1148 = vpop.f32.mrb[0].mxu0
      %v1149 = vadd.f32 0.0, %v1148
      %v1150 = vpop.f32.mrb[0].mxu0
      %v1151 = vpop.f32.mrb[0].mxu0
      %v1152 = vadd.f32 0.0, %v1151
      %v1153 = vpop.f32.mrb[0].mxu0
      %1154 = vmatprep.mubr.bf16.mxu0 0
      %1155 = vmatmul.mubr.bf16.gmra.mrb[0].mxu0 %v1076
      %v1156 = vpop.f32.mrb[0].mxu0
      %v1157 = vadd.f32 0.0, %v1156
      %v1158 = vpop.f32.mrb[0].mxu0
      %v1159 = vpop.f32.mrb[0].mxu0
      %v1160 = vadd.f32 0.0, %v1159
      %v1161 = vpop.f32.mrb[0].mxu0
      %1162 = vmatprep.mubr.bf16.mxu0 0
      %1163 = vmatmul.mubr.bf16.gmra.mrb[0].mxu0 %v1077
      %v1164 = vpop.f32.mrb[0].mxu0
      %v1165 = vadd.f32 0.0, %v1164
      %v1166 = vpop.f32.mrb[0].mxu0
      %v1167 = vpop.f32.mrb[0].mxu0
      %v1168 = vadd.f32 0.0, %v1167
      %v1169 = vpop.f32.mrb[0].mxu0
      %1170 = vmatprep.mubr.bf16.mxu0 0
      %1171 = vmatmul.mubr.bf16.gmra.mrb[0].mxu0 %v1078
      %v1172 = vpop.f32.mrb[0].mxu0
      %v1173 = vadd.f32 0.0, %v1172
      %v1174 = vpop.f32.mrb[0].mxu0
      %v1175 = vpop.f32.mrb[0].mxu0
      %v1176 = vadd.f32 0.0, %v1175
      %v1177 = vpop.f32.mrb[0].mxu0
      %1178 = vmatprep.mubr.bf16.mxu0 0
      %1179 = vmatmul.mubr.bf16.gmra.mrb[0].mxu0 %v1079
      %v1180 = vpop.f32.mrb[0].mxu0
      %v1181 = vadd.f32 0.0, %v1180
      %v1182 = vpop.f32.mrb[0].mxu0
      %v1183 = vpop.f32.mrb[0].mxu0
      %v1184 = vadd.f32 0.0, %v1183
      %v1185 = vpop.f32.mrb[0].mxu0
      %1186 = vmatprep.mubr.bf16.mxu0 0
      %1187 = vmatmul.mubr.bf16.gmra.mrb[0].mxu0 %v1080
      %v1188 = vpop.f32.mrb[0].mxu0
      %v1189 = vadd.f32 0.0, %v1188
      %v1190 = vpop.f32.mrb[0].mxu0
      %v1191 = vpop.f32.mrb[0].mxu0
      %v1192 = vadd.f32 0.0, %v1191
      %v1193 = vpop.f32.mrb[0].mxu0
      %1194 = vmatprep.mubr.bf16.mxu0 0
      %1195 = vmatmul.mubr.bf16.gmra.mrb[0].mxu0 %v1081
      %v1196 = vpop.f32.mrb[0].mxu0
      %v1197 = vadd.f32 0.0, %v1196
      %v1198 = vpop.f32.mrb[0].mxu0
      %v1199 = vpop.f32.mrb[0].mxu0
      %v1200 = vadd.f32 0.0, %v1199
      %v1201 = vpop.f32.mrb[0].mxu0
      %1202 = vmatprep.mubr.bf16.mxu0 0
      %1203 = vmatmul.mubr.bf16.gmra.mrb[0].mxu0 %v1082
      %v1204 = vpop.f32.mrb[0].mxu0
      %v1205 = vadd.f32 0.0, %v1204
      %v1206 = vpop.f32.mrb[0].mxu0
      %v1207 = vpop.f32.mrb[0].mxu0
      %v1208 = vadd.f32 0.0, %v1207
      %v1209 = vpop.f32.mrb[0].mxu0
      %1210 = vmatprep.mubr.bf16.mxu0 0
      %1211 = vmatmul.mubr.bf16.gmra.mrb[0].mxu0 %v1083
      %v1212 = vpop.f32.mrb[0].mxu0
      %v1213 = vadd.f32 0.0, %v1212
      %v1214 = vpop.f32.mrb[0].mxu0
      %v1215 = vpop.f32.mrb[0].mxu0
      %v1216 = vadd.f32 0.0, %v1215
      %v1217 = vpop.f32.mrb[0].mxu0
      %1218 = vmatprep.mubr.bf16.mxu0 0
      %1219 = vmatmul.mubr.bf16.gmra.mrb[0].mxu0 %v1084
      %v1220 = vpop.f32.mrb[0].mxu0
      %v1221 = vadd.f32 0.0, %v1220
      %v1222 = vpop.f32.mrb[0].mxu0
      %v1223 = vpop.f32.mrb[0].mxu0
      %v1224 = vadd.f32 0.0, %v1223
      %v1225 = vpop.f32.mrb[0].mxu0
      %1226 = vmatprep.mubr.bf16.mxu0 0
      %1227 = vmatmul.mubr.bf16.gmra.mrb[0].mxu0 %v1085
      %v1228 = vpop.f32.mrb[0].mxu0
      %v1229 = vadd.f32 0.0, %v1228
      %v1230 = vpop.f32.mrb[0].mxu0
      %v1231 = vpop.f32.mrb[0].mxu0
      %v1232 = vadd.f32 0.0, %v1231
      %v1233 = vpop.f32.mrb[0].mxu0
      %1234 = vmatprep.mubr.bf16.mxu0 0
      %1235 = vmatmul.mubr.bf16.gmra.mrb[0].mxu0 %v1086
      %v1236 = vpop.f32.mrb[0].mxu0
      %v1237 = vadd.f32 0.0, %v1236
      %v1238 = vpop.f32.mrb[0].mxu0
      %v1239 = vpop.f32.mrb[0].mxu0
      %v1240 = vadd.f32 0.0, %v1239
      %v1241 = vpop.f32.mrb[0].mxu0
      %1242 = vmatprep.mubr.bf16.mxu0 0
      %1243 = vmatmul.mubr.bf16.gmra.mrb[0].mxu0 %v1087
      %v1244 = vpop.f32.mrb[0].mxu0
      %v1245 = vadd.f32 0.0, %v1244
      %v1246 = vpop.f32.mrb[0].mxu0
      %v1247 = vpop.f32.mrb[0].mxu0
      %v1248 = vadd.f32 0.0, %v1247
      %v1249 = vpop.f32.mrb[0].mxu0
      %1250 = vmatprep.mubr.bf16.mxu0 0
      %1251 = vmatmul.mubr.bf16.gmra.mrb[0].mxu0 %v1088
      %v1252 = vpop.f32.mrb[0].mxu0
      %v1253 = vadd.f32 0.0, %v1252
      %v1254 = vpop.f32.mrb[0].mxu0
      %v1255 = vpop.f32.mrb[0].mxu0
      %v1256 = vadd.f32 0.0, %v1255
      %v1257 = vpop.f32.mrb[0].mxu0
      %1258 = vmatprep.mubr.bf16.mxu0 0
      %1259 = vmatmul.mubr.bf16.gmra.mrb[0].mxu0 %v1089
      %v1260 = vpop.f32.mrb[0].mxu0
      %v1261 = vadd.f32 0.0, %v1260
      %v1262 = vpop.f32.mrb[0].mxu0
      %v1263 = vpop.f32.mrb[0].mxu0
      %v1264 = vadd.f32 0.0, %v1263
      %v1265 = vpop.f32.mrb[0].mxu0
      %1266 = vdwg.mxu0
      %v1267 = vld [vmem:[#allocation2] sm:$0xff]
      %v1268 = vld [vmem:[#allocation2 + $0x8] sm:$0xff]
      %v1269 = vld [vmem:[#allocation2 + $0x10] sm:$0xff]
      %v1270 = vld [vmem:[#allocation2 + $0x18] sm:$0xff]
      %v1271 = vld [vmem:[#allocation2 + $0x20] sm:$0xff]
      %v1272 = vld [vmem:[#allocation2 + $0x28] sm:$0xff]
      %v1273 = vld [vmem:[#allocation2 + $0x30] sm:$0xff]
      %v1274 = vld [vmem:[#allocation2 + $0x38] sm:$0xff]
      %v1275 = vld [vmem:[#allocation2 + $0x40] sm:$0xff]
      %v1276 = vld [vmem:[#allocation2 + $0x48] sm:$0xff]
      %v1277 = vld [vmem:[#allocation2 + $0x50] sm:$0xff]
      %v1278 = vld [vmem:[#allocation2 + $0x58] sm:$0xff]
      %v1279 = vld [vmem:[#allocation2 + $0x60] sm:$0xff]
      %v1280 = vld [vmem:[#allocation2 + $0x68] sm:$0xff]
      %v1281 = vld [vmem:[#allocation2 + $0x70] sm:$0xff]
      %v1282 = vld [vmem:[#allocation2 + $0x78] sm:$0xff]
      %v1283 = vld [vmem:[#allocation2 + $0x80] sm:$0xff]
      %v1284 = vld [vmem:[#allocation2 + $0x88] sm:$0xff]
      %v1285 = vld [vmem:[#allocation2 + $0x90] sm:$0xff]
      %v1286 = vld [vmem:[#allocation2 + $0x98] sm:$0xff]
      %v1287 = vld [vmem:[#allocation2 + $0xa0] sm:$0xff]
      %v1288 = vld [vmem:[#allocation2 + $0xa8] sm:$0xff]
      %v1289 = vld [vmem:[#allocation2 + $0xb0] sm:$0xff]
      %v1290 = vld [vmem:[#allocation2 + $0xb8] sm:$0xff]
      %v1291 = vld [vmem:[#allocation2 + $0xc0] sm:$0xff]
      %v1292 = vld [vmem:[#allocation2 + $0xc8] sm:$0xff]
      %v1293 = vld [vmem:[#allocation2 + $0xd0] sm:$0xff]
      %v1294 = vld [vmem:[#allocation2 + $0xd8] sm:$0xff]
      %v1295 = vld [vmem:[#allocation2 + $0xe0] sm:$0xff]
      %v1296 = vld [vmem:[#allocation2 + $0xe8] sm:$0xff]
      %v1297 = vld [vmem:[#allocation2 + $0xf0] sm:$0xff]
      %v1298 = vld [vmem:[#allocation2 + $0xf8] sm:$0xff]
      %v1299 = vmax.f32 %v1267, %v1141
      %v1300 = vmax.f32 %v1268, %v1144
      %v1301 = vmax.f32 %v1269, %v1149
      %v1302 = vmax.f32 %v1270, %v1152
      %v1303 = vmax.f32 %v1271, %v1157
      %v1304 = vmax.f32 %v1272, %v1160
      %v1305 = vmax.f32 %v1273, %v1165
      %v1306 = vmax.f32 %v1274, %v1168
      %v1307 = vmax.f32 %v1275, %v1173
      %v1308 = vmax.f32 %v1276, %v1176
      %v1309 = vmax.f32 %v1277, %v1181
      %v1310 = vmax.f32 %v1278, %v1184
      %v1311 = vmax.f32 %v1279, %v1189
      %v1312 = vmax.f32 %v1280, %v1192
      %v1313 = vmax.f32 %v1281, %v1197
      %v1314 = vmax.f32 %v1282, %v1200
      %v1315 = vmax.f32 %v1283, %v1205
      %v1316 = vmax.f32 %v1284, %v1208
      %v1317 = vmax.f32 %v1285, %v1213
      %v1318 = vmax.f32 %v1286, %v1216
      %v1319 = vmax.f32 %v1287, %v1221
      %v1320 = vmax.f32 %v1288, %v1224
      %v1321 = vmax.f32 %v1289, %v1229
      %v1322 = vmax.f32 %v1290, %v1232
      %v1323 = vmax.f32 %v1291, %v1237
      %v1324 = vmax.f32 %v1292, %v1240
      %v1325 = vmax.f32 %v1293, %v1245
      %v1326 = vmax.f32 %v1294, %v1248
      %v1327 = vmax.f32 %v1295, %v1253
      %v1328 = vmax.f32 %v1296, %v1256
      %v1329 = vmax.f32 %v1297, %v1261
      %v1330 = vmax.f32 %v1298, %v1264
      %1331 = vst [vmem:[#allocation2] sm:$0xff] %v1299
      %1332 = vst [vmem:[#allocation2 + $0x8] sm:$0xff] %v1300
      %1333 = vst [vmem:[#allocation2 + $0x10] sm:$0xff] %v1301
      %1334 = vst [vmem:[#allocation2 + $0x18] sm:$0xff] %v1302
      %1335 = vst [vmem:[#allocation2 + $0x20] sm:$0xff] %v1303
      %1336 = vst [vmem:[#allocation2 + $0x28] sm:$0xff] %v1304
      %1337 = vst [vmem:[#allocation2 + $0x30] sm:$0xff] %v1305
      %1338 = vst [vmem:[#allocation2 + $0x38] sm:$0xff] %v1306
      %1339 = vst [vmem:[#allocation2 + $0x40] sm:$0xff] %v1307
      %1340 = vst [vmem:[#allocation2 + $0x48] sm:$0xff] %v1308
      %1341 = vst [vmem:[#allocation2 + $0x50] sm:$0xff] %v1309
      %1342 = vst [vmem:[#allocation2 + $0x58] sm:$0xff] %v1310
      %1343 = vst [vmem:[#allocation2 + $0x60] sm:$0xff] %v1311
      %1344 = vst [vmem:[#allocation2 + $0x68] sm:$0xff] %v1312
      %1345 = vst [vmem:[#allocation2 + $0x70] sm:$0xff] %v1313
      %1346 = vst [vmem:[#allocation2 + $0x78] sm:$0xff] %v1314
      %1347 = vst [vmem:[#allocation2 + $0x80] sm:$0xff] %v1315
      %1348 = vst [vmem:[#allocation2 + $0x88] sm:$0xff] %v1316
      %1349 = vst [vmem:[#allocation2 + $0x90] sm:$0xff] %v1317
      %1350 = vst [vmem:[#allocation2 + $0x98] sm:$0xff] %v1318
      %1351 = vst [vmem:[#allocation2 + $0xa0] sm:$0xff] %v1319
      %1352 = vst [vmem:[#allocation2 + $0xa8] sm:$0xff] %v1320
      %1353 = vst [vmem:[#allocation2 + $0xb0] sm:$0xff] %v1321
      %1354 = vst [vmem:[#allocation2 + $0xb8] sm:$0xff] %v1322
      %1355 = vst [vmem:[#allocation2 + $0xc0] sm:$0xff] %v1323
      %1356 = vst [vmem:[#allocation2 + $0xc8] sm:$0xff] %v1324
      %1357 = vst [vmem:[#allocation2 + $0xd0] sm:$0xff] %v1325
      %1358 = vst [vmem:[#allocation2 + $0xd8] sm:$0xff] %v1326
      %1359 = vst [vmem:[#allocation2 + $0xe0] sm:$0xff] %v1327
      %1360 = vst [vmem:[#allocation2 + $0xe8] sm:$0xff] %v1328
      %1361 = vst [vmem:[#allocation2 + $0xf0] sm:$0xff] %v1329
      %1362 = vst [vmem:[#allocation2 + $0xf8] sm:$0xff] %v1330
      %p1363 = scmp.eq.s32.totalorder %s27, 2
      // Predicated region
      $region69: #{pointnet_plusplus_forward.1} parent=63 // pred_check
        %p1364 = pneg %p1363
      $region70: #{pointnet_plusplus_forward.1} parent=63 // pred_check_branch
        %1366 = sbr.rel (%p1364) target = $region72
      $region71: #{pointnet_plusplus_forward.1} parent=63 // pred_region
        %v1367 = vld [vmem:[#allocation2] sm:$0xff]
        %v1368 = vld [vmem:[#allocation2 + $0x8] sm:$0xff]
        %v1369 = vld [vmem:[#allocation2 + $0x10] sm:$0xff]
        %v1370 = vld [vmem:[#allocation2 + $0x18] sm:$0xff]
        %v1371 = vld [vmem:[#allocation2 + $0x20] sm:$0xff]
        %v1372 = vld [vmem:[#allocation2 + $0x28] sm:$0xff]
        %v1373 = vld [vmem:[#allocation2 + $0x30] sm:$0xff]
        %v1374 = vld [vmem:[#allocation2 + $0x38] sm:$0xff]
        %v1375 = vld [vmem:[#allocation2 + $0x40] sm:$0xff]
        %v1376 = vld [vmem:[#allocation2 + $0x48] sm:$0xff]
        %v1377 = vld [vmem:[#allocation2 + $0x50] sm:$0xff]
        %v1378 = vld [vmem:[#allocation2 + $0x58] sm:$0xff]
        %v1379 = vld [vmem:[#allocation2 + $0x60] sm:$0xff]
        %v1380 = vld [vmem:[#allocation2 + $0x68] sm:$0xff]
        %v1381 = vld [vmem:[#allocation2 + $0x70] sm:$0xff]
        %v1382 = vld [vmem:[#allocation2 + $0x78] sm:$0xff]
        %v1383 = vld [vmem:[#allocation2 + $0x80] sm:$0xff]
        %v1384 = vld [vmem:[#allocation2 + $0x88] sm:$0xff]
        %v1385 = vld [vmem:[#allocation2 + $0x90] sm:$0xff]
        %v1386 = vld [vmem:[#allocation2 + $0x98] sm:$0xff]
        %v1387 = vld [vmem:[#allocation2 + $0xa0] sm:$0xff]
        %v1388 = vld [vmem:[#allocation2 + $0xa8] sm:$0xff]
        %v1389 = vld [vmem:[#allocation2 + $0xb0] sm:$0xff]
        %v1390 = vld [vmem:[#allocation2 + $0xb8] sm:$0xff]
        %v1391 = vld [vmem:[#allocation2 + $0xc0] sm:$0xff]
        %v1392 = vld [vmem:[#allocation2 + $0xc8] sm:$0xff]
        %v1393 = vld [vmem:[#allocation2 + $0xd0] sm:$0xff]
        %v1394 = vld [vmem:[#allocation2 + $0xd8] sm:$0xff]
        %v1395 = vld [vmem:[#allocation2 + $0xe0] sm:$0xff]
        %v1396 = vld [vmem:[#allocation2 + $0xe8] sm:$0xff]
        %v1397 = vld [vmem:[#allocation2 + $0xf0] sm:$0xff]
        %v1398 = vld [vmem:[#allocation2 + $0xf8] sm:$0xff]
        %1399 = vmax.xlane.f32.xlu0 %v1367
        %v1400 = vpop.xlane.xlu0 %1399
        %1401 = vmax.xlane.f32.xlu0 %v1368
        %v1402 = vpop.xlane.xlu0 %1401
        %1403 = vmax.xlane.f32.xlu0 %v1369
        %v1404 = vpop.xlane.xlu0 %1403
        %1405 = vmax.xlane.f32.xlu0 %v1370
        %v1406 = vpop.xlane.xlu0 %1405
        %1407 = vmax.xlane.f32.xlu0 %v1371
        %v1408 = vpop.xlane.xlu0 %1407
        %1409 = vmax.xlane.f32.xlu0 %v1372
        %v1410 = vpop.xlane.xlu0 %1409
        %1411 = vmax.xlane.f32.xlu0 %v1373
        %v1412 = vpop.xlane.xlu0 %1411
        %1413 = vmax.xlane.f32.xlu0 %v1374
        %v1414 = vpop.xlane.xlu0 %1413
        %1415 = vmax.xlane.f32.xlu0 %v1375
        %v1416 = vpop.xlane.xlu0 %1415
        %1417 = vmax.xlane.f32.xlu0 %v1376
        %v1418 = vpop.xlane.xlu0 %1417
        %1419 = vmax.xlane.f32.xlu0 %v1377
        %v1420 = vpop.xlane.xlu0 %1419
        %1421 = vmax.xlane.f32.xlu0 %v1378
        %v1422 = vpop.xlane.xlu0 %1421
        %1423 = vmax.xlane.f32.xlu0 %v1379
        %v1424 = vpop.xlane.xlu0 %1423
        %1425 = vmax.xlane.f32.xlu0 %v1380
        %v1426 = vpop.xlane.xlu0 %1425
        %1427 = vmax.xlane.f32.xlu0 %v1381
        %v1428 = vpop.xlane.xlu0 %1427
        %1429 = vmax.xlane.f32.xlu0 %v1382
        %v1430 = vpop.xlane.xlu0 %1429
        %1431 = vmax.xlane.f32.xlu0 %v1383
        %v1432 = vpop.xlane.xlu0 %1431
        %1433 = vmax.xlane.f32.xlu0 %v1384
        %v1434 = vpop.xlane.xlu0 %1433
        %1435 = vmax.xlane.f32.xlu0 %v1385
        %v1436 = vpop.xlane.xlu0 %1435
        %1437 = vmax.xlane.f32.xlu0 %v1386
        %v1438 = vpop.xlane.xlu0 %1437
        %1439 = vmax.xlane.f32.xlu0 %v1387
        %v1440 = vpop.xlane.xlu0 %1439
        %1441 = vmax.xlane.f32.xlu0 %v1388
        %v1442 = vpop.xlane.xlu0 %1441
        %1443 = vmax.xlane.f32.xlu0 %v1389
        %v1444 = vpop.xlane.xlu0 %1443
        %1445 = vmax.xlane.f32.xlu0 %v1390
        %v1446 = vpop.xlane.xlu0 %1445
        %1447 = vmax.xlane.f32.xlu0 %v1391
        %v1448 = vpop.xlane.xlu0 %1447
        %1449 = vmax.xlane.f32.xlu0 %v1392
        %v1450 = vpop.xlane.xlu0 %1449
        %1451 = vmax.xlane.f32.xlu0 %v1393
        %v1452 = vpop.xlane.xlu0 %1451
        %1453 = vmax.xlane.f32.xlu0 %v1394
        %v1454 = vpop.xlane.xlu0 %1453
        %1455 = vmax.xlane.f32.xlu0 %v1395
        %v1456 = vpop.xlane.xlu0 %1455
        %1457 = vmax.xlane.f32.xlu0 %v1396
        %v1458 = vpop.xlane.xlu0 %1457
        %1459 = vmax.xlane.f32.xlu0 %v1397
        %v1460 = vpop.xlane.xlu0 %1459
        %1461 = vmax.xlane.f32.xlu0 %v1398
        %v1462 = vpop.xlane.xlu0 %1461
        %v1463 = vld [vmem:[%s6] sm:$0xff]
        %v1464 = vld [vmem:[%s6 + $0x8] sm:$0xff]
        %v1465 = vld [vmem:[%s6 + $0x10] sm:$0xff]
        %v1466 = vld [vmem:[%s6 + $0x18] sm:$0xff]
        %v1467 = vld [vmem:[%s6 + $0x20] sm:$0xff]
        %v1468 = vld [vmem:[%s6 + $0x28] sm:$0xff]
        %v1469 = vld [vmem:[%s6 + $0x30] sm:$0xff]
        %v1470 = vld [vmem:[%s6 + $0x38] sm:$0xff]
        %v1471 = vld [vmem:[%s6 + $0x40] sm:$0xff]
        %v1472 = vld [vmem:[%s6 + $0x48] sm:$0xff]
        %v1473 = vld [vmem:[%s6 + $0x50] sm:$0xff]
        %v1474 = vld [vmem:[%s6 + $0x58] sm:$0xff]
        %v1475 = vld [vmem:[%s6 + $0x60] sm:$0xff]
        %v1476 = vld [vmem:[%s6 + $0x68] sm:$0xff]
        %v1477 = vld [vmem:[%s6 + $0x70] sm:$0xff]
        %v1478 = vld [vmem:[%s6 + $0x78] sm:$0xff]
        %v1479 = vld [vmem:[%s6 + $0x80] sm:$0xff]
        %v1480 = vld [vmem:[%s6 + $0x88] sm:$0xff]
        %v1481 = vld [vmem:[%s6 + $0x90] sm:$0xff]
        %v1482 = vld [vmem:[%s6 + $0x98] sm:$0xff]
        %v1483 = vld [vmem:[%s6 + $0xa0] sm:$0xff]
        %v1484 = vld [vmem:[%s6 + $0xa8] sm:$0xff]
        %v1485 = vld [vmem:[%s6 + $0xb0] sm:$0xff]
        %v1486 = vld [vmem:[%s6 + $0xb8] sm:$0xff]
        %v1487 = vld [vmem:[%s6 + $0xc0] sm:$0xff]
        %v1488 = vld [vmem:[%s6 + $0xc8] sm:$0xff]
        %v1489 = vld [vmem:[%s6 + $0xd0] sm:$0xff]
        %v1490 = vld [vmem:[%s6 + $0xd8] sm:$0xff]
        %v1491 = vld [vmem:[%s6 + $0xe0] sm:$0xff]
        %v1492 = vld [vmem:[%s6 + $0xe8] sm:$0xff]
        %v1493 = vld [vmem:[%s6 + $0xf0] sm:$0xff]
        %v1494 = vld [vmem:[%s6 + $0xf8] sm:$0xff]
        %v1495 = vadd.f32 %v1400, %v1463
        %v1496 = vadd.f32 %v1402, %v1464
        %v1497 = vadd.f32 %v1404, %v1465
        %v1498 = vadd.f32 %v1406, %v1466
        %v1499 = vadd.f32 %v1408, %v1467
        %v1500 = vadd.f32 %v1410, %v1468
        %v1501 = vadd.f32 %v1412, %v1469
        %v1502 = vadd.f32 %v1414, %v1470
        %v1503 = vadd.f32 %v1416, %v1471
        %v1504 = vadd.f32 %v1418, %v1472
        %v1505 = vadd.f32 %v1420, %v1473
        %v1506 = vadd.f32 %v1422, %v1474
        %v1507 = vadd.f32 %v1424, %v1475
        %v1508 = vadd.f32 %v1426, %v1476
        %v1509 = vadd.f32 %v1428, %v1477
        %v1510 = vadd.f32 %v1430, %v1478
        %v1511 = vadd.f32 %v1432, %v1479
        %v1512 = vadd.f32 %v1434, %v1480
        %v1513 = vadd.f32 %v1436, %v1481
        %v1514 = vadd.f32 %v1438, %v1482
        %v1515 = vadd.f32 %v1440, %v1483
        %v1516 = vadd.f32 %v1442, %v1484
        %v1517 = vadd.f32 %v1444, %v1485
        %v1518 = vadd.f32 %v1446, %v1486
        %v1519 = vadd.f32 %v1448, %v1487
        %v1520 = vadd.f32 %v1450, %v1488
        %v1521 = vadd.f32 %v1452, %v1489
        %v1522 = vadd.f32 %v1454, %v1490
        %v1523 = vadd.f32 %v1456, %v1491
        %v1524 = vadd.f32 %v1458, %v1492
        %v1525 = vadd.f32 %v1460, %v1493
        %v1526 = vadd.f32 %v1462, %v1494
        %v1527 = vmax.f32 %v1495, 0.0
        %v1528 = vmax.f32 %v1496, 0.0
        %v1529 = vmax.f32 %v1497, 0.0
        %v1530 = vmax.f32 %v1498, 0.0
        %v1531 = vmax.f32 %v1499, 0.0
        %v1532 = vmax.f32 %v1500, 0.0
        %v1533 = vmax.f32 %v1501, 0.0
        %v1534 = vmax.f32 %v1502, 0.0
        %v1535 = vmax.f32 %v1503, 0.0
        %v1536 = vmax.f32 %v1504, 0.0
        %v1537 = vmax.f32 %v1505, 0.0
        %v1538 = vmax.f32 %v1506, 0.0
        %v1539 = vmax.f32 %v1507, 0.0
        %v1540 = vmax.f32 %v1508, 0.0
        %v1541 = vmax.f32 %v1509, 0.0
        %v1542 = vmax.f32 %v1510, 0.0
        %v1543 = vmax.f32 %v1511, 0.0
        %v1544 = vmax.f32 %v1512, 0.0
        %v1545 = vmax.f32 %v1513, 0.0
        %v1546 = vmax.f32 %v1514, 0.0
        %v1547 = vmax.f32 %v1515, 0.0
        %v1548 = vmax.f32 %v1516, 0.0
        %v1549 = vmax.f32 %v1517, 0.0
        %v1550 = vmax.f32 %v1518, 0.0
        %v1551 = vmax.f32 %v1519, 0.0
        %v1552 = vmax.f32 %v1520, 0.0
        %v1553 = vmax.f32 %v1521, 0.0
        %v1554 = vmax.f32 %v1522, 0.0
        %v1555 = vmax.f32 %v1523, 0.0
        %v1556 = vmax.f32 %v1524, 0.0
        %v1557 = vmax.f32 %v1525, 0.0
        %v1558 = vmax.f32 %v1526, 0.0
        %v1559 = vpack.c.bf16 %v1528, %v1527
        %v1560 = vpack.c.bf16 %v1530, %v1529
        %v1561 = vpack.c.bf16 %v1532, %v1531
        %v1562 = vpack.c.bf16 %v1534, %v1533
        %v1563 = vpack.c.bf16 %v1536, %v1535
        %v1564 = vpack.c.bf16 %v1538, %v1537
        %v1565 = vpack.c.bf16 %v1540, %v1539
        %v1566 = vpack.c.bf16 %v1542, %v1541
        %v1567 = vpack.c.bf16 %v1544, %v1543
        %v1568 = vpack.c.bf16 %v1546, %v1545
        %v1569 = vpack.c.bf16 %v1548, %v1547
        %v1570 = vpack.c.bf16 %v1550, %v1549
        %v1571 = vpack.c.bf16 %v1552, %v1551
        %v1572 = vpack.c.bf16 %v1554, %v1553
        %v1573 = vpack.c.bf16 %v1556, %v1555
        %v1574 = vpack.c.bf16 %v1558, %v1557
        %1576 = vset.pattern.permute.xlu0 0
        %1577 = vperm.xlu0 %1576, %v1559
        %v1578 = vpop.permute.xlu0 %1577
        %1581 = vset.pattern.permute.xlu0 0
        %1582 = vperm.xlu0 %1581, %v1560
        %v1583 = vpop.permute.xlu0 %1582
        %1586 = vset.pattern.permute.xlu0 0
        %1587 = vperm.xlu0 %1586, %v1561
        %v1588 = vpop.permute.xlu0 %1587
        %1591 = vset.pattern.permute.xlu0 0
        %1592 = vperm.xlu0 %1591, %v1562
        %v1593 = vpop.permute.xlu0 %1592
        %1596 = vset.pattern.permute.xlu0 0
        %1597 = vperm.xlu0 %1596, %v1563
        %v1598 = vpop.permute.xlu0 %1597
        %1601 = vset.pattern.permute.xlu0 0
        %1602 = vperm.xlu0 %1601, %v1564
        %v1603 = vpop.permute.xlu0 %1602
        %1606 = vset.pattern.permute.xlu0 0
        %1607 = vperm.xlu0 %1606, %v1565
        %v1608 = vpop.permute.xlu0 %1607
        %1611 = vset.pattern.permute.xlu0 0
        %1612 = vperm.xlu0 %1611, %v1566
        %v1613 = vpop.permute.xlu0 %1612
        %1616 = vset.pattern.permute.xlu0 0
        %1617 = vperm.xlu0 %1616, %v1567
        %v1618 = vpop.permute.xlu0 %1617
        %1621 = vset.pattern.permute.xlu0 0
        %1622 = vperm.xlu0 %1621, %v1568
        %v1623 = vpop.permute.xlu0 %1622
        %1626 = vset.pattern.permute.xlu0 0
        %1627 = vperm.xlu0 %1626, %v1569
        %v1628 = vpop.permute.xlu0 %1627
        %1631 = vset.pattern.permute.xlu0 0
        %1632 = vperm.xlu0 %1631, %v1570
        %v1633 = vpop.permute.xlu0 %1632
        %1636 = vset.pattern.permute.xlu0 0
        %1637 = vperm.xlu0 %1636, %v1571
        %v1638 = vpop.permute.xlu0 %1637
        %1641 = vset.pattern.permute.xlu0 0
        %1642 = vperm.xlu0 %1641, %v1572
        %v1643 = vpop.permute.xlu0 %1642
        %1646 = vset.pattern.permute.xlu0 0
        %1647 = vperm.xlu0 %1646, %v1573
        %v1648 = vpop.permute.xlu0 %1647
        %1651 = vset.pattern.permute.xlu0 0
        %1652 = vperm.xlu0 %1651, %v1574
        %v1653 = vpop.permute.xlu0 %1652
        %v1655 = vld [vmem:[%s7] sm:$0xff]
        %v1656 = vld [vmem:[%s7 + $0x8] sm:$0xff]
        %v1657 = vld [vmem:[%s7 + $0x10] sm:$0xff]
        %v1658 = vld [vmem:[%s7 + $0x18] sm:$0xff]
        %v1659 = vld [vmem:[%s7 + $0x20] sm:$0xff]
        %v1660 = vld [vmem:[%s7 + $0x28] sm:$0xff]
        %v1661 = vld [vmem:[%s7 + $0x30] sm:$0xff]
        %v1662 = vld [vmem:[%s7 + $0x38] sm:$0xff]
        %v1663 = vld [vmem:[%s7 + $0x40] sm:$0xff]
        %v1664 = vld [vmem:[%s7 + $0x48] sm:$0xff]
        %v1665 = vld [vmem:[%s7 + $0x50] sm:$0xff]
        %v1666 = vld [vmem:[%s7 + $0x58] sm:$0xff]
        %v1667 = vld [vmem:[%s7 + $0x60] sm:$0xff]
        %v1668 = vld [vmem:[%s7 + $0x68] sm:$0xff]
        %v1669 = vld [vmem:[%s7 + $0x70] sm:$0xff]
        %v1670 = vld [vmem:[%s7 + $0x78] sm:$0xff]
        %v1671 = vld [vmem:[%s8] sm:$0xff]
        %v1672 = vld [vmem:[%s8 + $0x8] sm:$0xff]
        %v1673 = vld [vmem:[%s8 + $0x10] sm:$0xff]
        %v1674 = vld [vmem:[%s8 + $0x18] sm:$0xff]
        %v1675 = vld [vmem:[%s8 + $0x20] sm:$0xff]
        %v1676 = vld [vmem:[%s8 + $0x28] sm:$0xff]
        %v1677 = vld [vmem:[%s8 + $0x30] sm:$0xff]
        %v1678 = vld [vmem:[%s8 + $0x38] sm:$0xff]
        %v1679 = vld [vmem:[%s8 + $0x40] sm:$0xff]
        %v1680 = vld [vmem:[%s8 + $0x48] sm:$0xff]
        %v1681 = vld [vmem:[%s8 + $0x50] sm:$0xff]
        %v1682 = vld [vmem:[%s8 + $0x58] sm:$0xff]
        %v1683 = vld [vmem:[%s8 + $0x60] sm:$0xff]
        %v1684 = vld [vmem:[%s8 + $0x68] sm:$0xff]
        %v1685 = vld [vmem:[%s8 + $0x70] sm:$0xff]
        %v1686 = vld [vmem:[%s8 + $0x78] sm:$0xff]
        %1688 = vset.pattern.permute.xlu0 0
        %1689 = vperm.xlu0 %1688, %v1671
        %v1690 = vpop.permute.xlu0 %1689
        %1693 = vset.pattern.permute.xlu0 0
        %1694 = vperm.xlu0 %1693, %v1672
        %v1695 = vpop.permute.xlu0 %1694
        %1698 = vset.pattern.permute.xlu0 0
        %1699 = vperm.xlu0 %1698, %v1673
        %v1700 = vpop.permute.xlu0 %1699
        %1703 = vset.pattern.permute.xlu0 0
        %1704 = vperm.xlu0 %1703, %v1674
        %v1705 = vpop.permute.xlu0 %1704
        %1708 = vset.pattern.permute.xlu0 0
        %1709 = vperm.xlu0 %1708, %v1675
        %v1710 = vpop.permute.xlu0 %1709
        %1713 = vset.pattern.permute.xlu0 0
        %1714 = vperm.xlu0 %1713, %v1676
        %v1715 = vpop.permute.xlu0 %1714
        %1718 = vset.pattern.permute.xlu0 0
        %1719 = vperm.xlu0 %1718, %v1677
        %v1720 = vpop.permute.xlu0 %1719
        %1723 = vset.pattern.permute.xlu0 0
        %1724 = vperm.xlu0 %1723, %v1678
        %v1725 = vpop.permute.xlu0 %1724
        %1728 = vset.pattern.permute.xlu0 0
        %1729 = vperm.xlu0 %1728, %v1679
        %v1730 = vpop.permute.xlu0 %1729
        %1733 = vset.pattern.permute.xlu0 0
        %1734 = vperm.xlu0 %1733, %v1680
        %v1735 = vpop.permute.xlu0 %1734
        %1738 = vset.pattern.permute.xlu0 0
        %1739 = vperm.xlu0 %1738, %v1681
        %v1740 = vpop.permute.xlu0 %1739
        %1743 = vset.pattern.permute.xlu0 0
        %1744 = vperm.xlu0 %1743, %v1682
        %v1745 = vpop.permute.xlu0 %1744
        %1748 = vset.pattern.permute.xlu0 0
        %1749 = vperm.xlu0 %1748, %v1683
        %v1750 = vpop.permute.xlu0 %1749
        %1753 = vset.pattern.permute.xlu0 0
        %1754 = vperm.xlu0 %1753, %v1684
        %v1755 = vpop.permute.xlu0 %1754
        %1758 = vset.pattern.permute.xlu0 0
        %1759 = vperm.xlu0 %1758, %v1685
        %v1760 = vpop.permute.xlu0 %1759
        %1763 = vset.pattern.permute.xlu0 0
        %1764 = vperm.xlu0 %1763, %v1686
        %v1765 = vpop.permute.xlu0 %1764
        %v1783 = vunpack.c.l.b16 %v1655
        %v1784 = vunpack.c.h.b16 %v1655
        %v1785 = vunpack.c.l.b16 %v1656
        %v1786 = vunpack.c.h.b16 %v1656
        %v1787 = vunpack.c.l.b16 %v1657
        %v1788 = vunpack.c.h.b16 %v1657
        %v1789 = vunpack.c.l.b16 %v1658
        %v1790 = vunpack.c.h.b16 %v1658
        %v1791 = vunpack.c.l.b16 %v1659
        %v1792 = vunpack.c.h.b16 %v1659
        %v1793 = vunpack.c.l.b16 %v1660
        %v1794 = vunpack.c.h.b16 %v1660
        %v1795 = vunpack.c.l.b16 %v1661
        %v1796 = vunpack.c.h.b16 %v1661
        %v1797 = vunpack.c.l.b16 %v1662
        %v1798 = vunpack.c.h.b16 %v1662
        %v1799 = vunpack.c.l.b16 %v1663
        %v1800 = vunpack.c.h.b16 %v1663
        %v1801 = vunpack.c.l.b16 %v1664
        %v1802 = vunpack.c.h.b16 %v1664
        %v1803 = vunpack.c.l.b16 %v1665
        %v1804 = vunpack.c.h.b16 %v1665
        %v1805 = vunpack.c.l.b16 %v1666
        %v1806 = vunpack.c.h.b16 %v1666
        %v1807 = vunpack.c.l.b16 %v1667
        %v1808 = vunpack.c.h.b16 %v1667
        %v1809 = vunpack.c.l.b16 %v1668
        %v1810 = vunpack.c.h.b16 %v1668
        %v1811 = vunpack.c.l.b16 %v1669
        %v1812 = vunpack.c.h.b16 %v1669
        %v1813 = vunpack.c.l.b16 %v1670
        %v1814 = vunpack.c.h.b16 %v1670
        %v1815 = vpack.c.b16 %v1785, %v1783
        %v1816 = vpack.c.b16 %v1786, %v1784
        %v1817 = vpack.c.b16 %v1789, %v1787
        %v1818 = vpack.c.b16 %v1790, %v1788
        %v1819 = vpack.c.b16 %v1793, %v1791
        %v1820 = vpack.c.b16 %v1794, %v1792
        %v1821 = vpack.c.b16 %v1797, %v1795
        %v1822 = vpack.c.b16 %v1798, %v1796
        %v1823 = vpack.c.b16 %v1801, %v1799
        %v1824 = vpack.c.b16 %v1802, %v1800
        %v1825 = vpack.c.b16 %v1805, %v1803
        %v1826 = vpack.c.b16 %v1806, %v1804
        %v1827 = vpack.c.b16 %v1809, %v1807
        %v1828 = vpack.c.b16 %v1810, %v1808
        %v1829 = vpack.c.b16 %v1813, %v1811
        %v1830 = vpack.c.b16 %v1814, %v1812
        %1847 = vmatprep.subr.bf16.mxu0 0
        %1848 = vmatpush1.bf16.msra.mxu0 %v1578
        %1849 = vmatprep.subr.bf16.mxu0 0
        %1850 = vmatpush1.bf16.msra.mxu0 %v1583
        %1851 = vmatprep.subr.bf16.mxu0 0
        %1852 = vmatpush1.bf16.msra.mxu0 %v1588
        %1853 = vmatprep.subr.bf16.mxu0 0
        %1854 = vmatpush1.bf16.msra.mxu0 %v1593
        %1855 = vmatprep.subr.bf16.mxu0 0
        %1856 = vmatpush1.bf16.msra.mxu0 %v1598
        %1857 = vmatprep.subr.bf16.mxu0 0
        %1858 = vmatpush1.bf16.msra.mxu0 %v1603
        %1859 = vmatprep.subr.bf16.mxu0 0
        %1860 = vmatpush1.bf16.msra.mxu0 %v1608
        %1861 = vmatprep.subr.bf16.mxu0 0
        %1862 = vmatpush1.bf16.msra.mxu0 %v1613
        %1863 = vmatprep.subr.bf16.mxu0 0
        %1864 = vmatpush1.bf16.msra.mxu0 %v1618
        %1865 = vmatprep.subr.bf16.mxu0 0
        %1866 = vmatpush1.bf16.msra.mxu0 %v1623
        %1867 = vmatprep.subr.bf16.mxu0 0
        %1868 = vmatpush1.bf16.msra.mxu0 %v1628
        %1869 = vmatprep.subr.bf16.mxu0 0
        %1870 = vmatpush1.bf16.msra.mxu0 %v1633
        %1871 = vmatprep.subr.bf16.mxu0 0
        %1872 = vmatpush1.bf16.msra.mxu0 %v1638
        %1873 = vmatprep.subr.bf16.mxu0 0
        %1874 = vmatpush1.bf16.msra.mxu0 %v1643
        %1875 = vmatprep.subr.bf16.mxu0 0
        %1876 = vmatpush1.bf16.msra.mxu0 %v1648
        %1877 = vmatprep.subr.bf16.mxu0 0
        %1878 = vmatpush1.bf16.msra.mxu0 %v1653
        %1879 = vmatprep.mubr.bf16.mxu0 %v1816
        %1880 = vmatmul.mubr.bf16.gmra.mrb[0].mxu0 %v1815
        %v1881 = vpop.f32.mrb[0].mxu0
        %v1882 = vadd.f32 %v1690, %v1881
        %v1883 = vpop.f32.mrb[0].mxu0
        %v1884 = vpop.f32.mrb[0].mxu0
        %v1885 = vadd.f32 %v1695, %v1884
        %v1886 = vpop.f32.mrb[0].mxu0
        %1887 = vmatprep.mubr.bf16.mxu0 %v1818
        %1888 = vmatmul.mubr.bf16.gmra.mrb[0].mxu0 %v1817
        %v1889 = vpop.f32.mrb[0].mxu0
        %v1890 = vadd.f32 %v1700, %v1889
        %v1891 = vpop.f32.mrb[0].mxu0
        %v1892 = vpop.f32.mrb[0].mxu0
        %v1893 = vadd.f32 %v1705, %v1892
        %v1894 = vpop.f32.mrb[0].mxu0
        %1895 = vmatprep.mubr.bf16.mxu0 %v1820
        %1896 = vmatmul.mubr.bf16.gmra.mrb[0].mxu0 %v1819
        %v1897 = vpop.f32.mrb[0].mxu0
        %v1898 = vadd.f32 %v1710, %v1897
        %v1899 = vpop.f32.mrb[0].mxu0
        %v1900 = vpop.f32.mrb[0].mxu0
        %v1901 = vadd.f32 %v1715, %v1900
        %v1902 = vpop.f32.mrb[0].mxu0
        %1903 = vmatprep.mubr.bf16.mxu0 %v1822
        %1904 = vmatmul.mubr.bf16.gmra.mrb[0].mxu0 %v1821
        %v1905 = vpop.f32.mrb[0].mxu0
        %v1906 = vadd.f32 %v1720, %v1905
        %v1907 = vpop.f32.mrb[0].mxu0
        %v1908 = vpop.f32.mrb[0].mxu0
        %v1909 = vadd.f32 %v1725, %v1908
        %v1910 = vpop.f32.mrb[0].mxu0
        %1911 = vmatprep.mubr.bf16.mxu0 %v1824
        %1912 = vmatmul.mubr.bf16.gmra.mrb[0].mxu0 %v1823
        %v1913 = vpop.f32.mrb[0].mxu0
        %v1914 = vadd.f32 %v1730, %v1913
        %v1915 = vpop.f32.mrb[0].mxu0
        %v1916 = vpop.f32.mrb[0].mxu0
        %v1917 = vadd.f32 %v1735, %v1916
        %v1918 = vpop.f32.mrb[0].mxu0
        %1919 = vmatprep.mubr.bf16.mxu0 %v1826
        %1920 = vmatmul.mubr.bf16.gmra.mrb[0].mxu0 %v1825
        %v1921 = vpop.f32.mrb[0].mxu0
        %v1922 = vadd.f32 %v1740, %v1921
        %v1923 = vpop.f32.mrb[0].mxu0
        %v1924 = vpop.f32.mrb[0].mxu0
        %v1925 = vadd.f32 %v1745, %v1924
        %v1926 = vpop.f32.mrb[0].mxu0
        %1927 = vmatprep.mubr.bf16.mxu0 %v1828
        %1928 = vmatmul.mubr.bf16.gmra.mrb[0].mxu0 %v1827
        %v1929 = vpop.f32.mrb[0].mxu0
        %v1930 = vadd.f32 %v1750, %v1929
        %v1931 = vpop.f32.mrb[0].mxu0
        %v1932 = vpop.f32.mrb[0].mxu0
        %v1933 = vadd.f32 %v1755, %v1932
        %v1934 = vpop.f32.mrb[0].mxu0
        %1935 = vmatprep.mubr.bf16.mxu0 %v1830
        %1936 = vmatmul.mubr.bf16.gmra.mrb[0].mxu0 %v1829
        %v1937 = vpop.f32.mrb[0].mxu0
        %v1938 = vadd.f32 %v1760, %v1937
        %v1939 = vpop.f32.mrb[0].mxu0
        %v1940 = vpop.f32.mrb[0].mxu0
        %v1941 = vadd.f32 %v1765, %v1940
        %v1942 = vpop.f32.mrb[0].mxu0
        %1943 = vdwg.mxu0
        %v1944 = vmax.f32 %v1882, 0.0
        %v1945 = vmax.f32 %v1885, 0.0
        %v1946 = vmax.f32 %v1890, 0.0
        %v1947 = vmax.f32 %v1893, 0.0
        %v1948 = vmax.f32 %v1898, 0.0
        %v1949 = vmax.f32 %v1901, 0.0
        %v1950 = vmax.f32 %v1906, 0.0
        %v1951 = vmax.f32 %v1909, 0.0
        %v1952 = vmax.f32 %v1914, 0.0
        %v1953 = vmax.f32 %v1917, 0.0
        %v1954 = vmax.f32 %v1922, 0.0
        %v1955 = vmax.f32 %v1925, 0.0
        %v1956 = vmax.f32 %v1930, 0.0
        %v1957 = vmax.f32 %v1933, 0.0
        %v1958 = vmax.f32 %v1938, 0.0
        %v1959 = vmax.f32 %v1941, 0.0
        %v1960 = vpack.c.bf16 %v1945, %v1944
        %v1961 = vpack.c.bf16 %v1947, %v1946
        %v1962 = vpack.c.bf16 %v1949, %v1948
        %v1963 = vpack.c.bf16 %v1951, %v1950
        %v1964 = vpack.c.bf16 %v1953, %v1952
        %v1965 = vpack.c.bf16 %v1955, %v1954
        %v1966 = vpack.c.bf16 %v1957, %v1956
        %v1967 = vpack.c.bf16 %v1959, %v1958
        %v1968 = vld [vmem:[%s9] sm:$0xf]
        %v1969 = vld [vmem:[%s9 + $0x4] sm:$0xf]
        %v1970 = vld [vmem:[%s9 + $0x8] sm:$0xf]
        %v1971 = vld [vmem:[%s9 + $0xc] sm:$0xf]
        %v1972 = vld [vmem:[%s9 + $0x10] sm:$0xf]
        %v1973 = vld [vmem:[%s9 + $0x14] sm:$0xf]
        %v1974 = vld [vmem:[%s9 + $0x18] sm:$0xf]
        %v1975 = vld [vmem:[%s9 + $0x1c] sm:$0xf]
        %v1976 = vld [vmem:[%s9 + $0x20] sm:$0xf]
        %v1977 = vld [vmem:[%s9 + $0x24] sm:$0xf]
        %v1978 = vld [vmem:[%s9 + $0x28] sm:$0xf]
        %v1979 = vld [vmem:[%s9 + $0x2c] sm:$0xf]
        %v1980 = vld [vmem:[%s9 + $0x30] sm:$0xf]
        %v1981 = vld [vmem:[%s9 + $0x34] sm:$0xf]
        %v1982 = vld [vmem:[%s9 + $0x38] sm:$0xf]
        %v1983 = vld [vmem:[%s9 + $0x3c] sm:$0xf]
        %v1984 = vld [vmem:[%s10] sm:$0xff]
        %v1985 = vld [vmem:[%s10 + $0x8] sm:$0xff]
        %v1986 = vld [vmem:[%s10 + $0x10] sm:$0xff]
        %v1987 = vld [vmem:[%s10 + $0x18] sm:$0xff]
        %v1988 = vld [vmem:[%s10 + $0x20] sm:$0xff]
        %v1989 = vld [vmem:[%s10 + $0x28] sm:$0xff]
        %v1990 = vld [vmem:[%s10 + $0x30] sm:$0xff]
        %v1991 = vld [vmem:[%s10 + $0x38] sm:$0xff]
        %v1992 = vld [vmem:[%s10 + $0x40] sm:$0xff]
        %v1993 = vld [vmem:[%s10 + $0x48] sm:$0xff]
        %v1994 = vld [vmem:[%s10 + $0x50] sm:$0xff]
        %v1995 = vld [vmem:[%s10 + $0x58] sm:$0xff]
        %v1996 = vld [vmem:[%s10 + $0x60] sm:$0xff]
        %v1997 = vld [vmem:[%s10 + $0x68] sm:$0xff]
        %v1998 = vld [vmem:[%s10 + $0x70] sm:$0xff]
        %v1999 = vld [vmem:[%s10 + $0x78] sm:$0xff]
        %2001 = vset.pattern.permute.xlu0 0
        %2002 = vperm.xlu0 %2001, %v1984
        %v2003 = vpop.permute.xlu0 %2002
        %2006 = vset.pattern.permute.xlu0 0
        %2007 = vperm.xlu0 %2006, %v1985
        %v2008 = vpop.permute.xlu0 %2007
        %2011 = vset.pattern.permute.xlu0 0
        %2012 = vperm.xlu0 %2011, %v1986
        %v2013 = vpop.permute.xlu0 %2012
        %2016 = vset.pattern.permute.xlu0 0
        %2017 = vperm.xlu0 %2016, %v1987
        %v2018 = vpop.permute.xlu0 %2017
        %2021 = vset.pattern.permute.xlu0 0
        %2022 = vperm.xlu0 %2021, %v1988
        %v2023 = vpop.permute.xlu0 %2022
        %2026 = vset.pattern.permute.xlu0 0
        %2027 = vperm.xlu0 %2026, %v1989
        %v2028 = vpop.permute.xlu0 %2027
        %2031 = vset.pattern.permute.xlu0 0
        %2032 = vperm.xlu0 %2031, %v1990
        %v2033 = vpop.permute.xlu0 %2032
        %2036 = vset.pattern.permute.xlu0 0
        %2037 = vperm.xlu0 %2036, %v1991
        %v2038 = vpop.permute.xlu0 %2037
        %2041 = vset.pattern.permute.xlu0 0
        %2042 = vperm.xlu0 %2041, %v1992
        %v2043 = vpop.permute.xlu0 %2042
        %2046 = vset.pattern.permute.xlu0 0
        %2047 = vperm.xlu0 %2046, %v1993
        %v2048 = vpop.permute.xlu0 %2047
        %2051 = vset.pattern.permute.xlu0 0
        %2052 = vperm.xlu0 %2051, %v1994
        %v2053 = vpop.permute.xlu0 %2052
        %2056 = vset.pattern.permute.xlu0 0
        %2057 = vperm.xlu0 %2056, %v1995
        %v2058 = vpop.permute.xlu0 %2057
        %2061 = vset.pattern.permute.xlu0 0
        %2062 = vperm.xlu0 %2061, %v1996
        %v2063 = vpop.permute.xlu0 %2062
        %2066 = vset.pattern.permute.xlu0 0
        %2067 = vperm.xlu0 %2066, %v1997
        %v2068 = vpop.permute.xlu0 %2067
        %2071 = vset.pattern.permute.xlu0 0
        %2072 = vperm.xlu0 %2071, %v1998
        %v2073 = vpop.permute.xlu0 %2072
        %2076 = vset.pattern.permute.xlu0 0
        %2077 = vperm.xlu0 %2076, %v1999
        %v2078 = vpop.permute.xlu0 %2077
        %v2096 = vunpack.c.l.b16 %v1968
        %v2097 = vunpack.c.l.b16 %v1969
        %v2098 = vunpack.c.l.b16 %v1970
        %v2099 = vunpack.c.l.b16 %v1971
        %v2100 = vunpack.c.l.b16 %v1972
        %v2101 = vunpack.c.l.b16 %v1973
        %v2102 = vunpack.c.l.b16 %v1974
        %v2103 = vunpack.c.l.b16 %v1975
        %v2104 = vunpack.c.l.b16 %v1976
        %v2105 = vunpack.c.l.b16 %v1977
        %v2106 = vunpack.c.l.b16 %v1978
        %v2107 = vunpack.c.l.b16 %v1979
        %v2108 = vunpack.c.l.b16 %v1980
        %v2109 = vunpack.c.l.b16 %v1981
        %v2110 = vunpack.c.l.b16 %v1982
        %v2111 = vunpack.c.l.b16 %v1983
        %v2112 = vpack.c.b16 %v2097, %v2096
        %v2113 = vpack.c.b16 %v2099, %v2098
        %v2114 = vpack.c.b16 %v2101, %v2100
        %v2115 = vpack.c.b16 %v2103, %v2102
        %v2116 = vpack.c.b16 %v2105, %v2104
        %v2117 = vpack.c.b16 %v2107, %v2106
        %v2118 = vpack.c.b16 %v2109, %v2108
        %v2119 = vpack.c.b16 %v2111, %v2110
        %2128 = vmatprep.subr.bf16.mxu0 0
        %2129 = vmatpush1.bf16.msra.mxu0 %v1960
        %2130 = vmatprep.subr.bf16.mxu0 0
        %2131 = vmatpush1.bf16.msra.mxu0 %v1961
        %2132 = vmatprep.subr.bf16.mxu0 0
        %2133 = vmatpush1.bf16.msra.mxu0 %v1962
        %2134 = vmatprep.subr.bf16.mxu0 0
        %2135 = vmatpush1.bf16.msra.mxu0 %v1963
        %2136 = vmatprep.subr.bf16.mxu0 0
        %2137 = vmatpush1.bf16.msra.mxu0 %v1964
        %2138 = vmatprep.subr.bf16.mxu0 0
        %2139 = vmatpush1.bf16.msra.mxu0 %v1965
        %2140 = vmatprep.subr.bf16.mxu0 0
        %2141 = vmatpush1.bf16.msra.mxu0 %v1966
        %2142 = vmatprep.subr.bf16.mxu0 0
        %2143 = vmatpush1.bf16.msra.mxu0 %v1967
        %2144 = vmatprep.subr.bf16.mxu0 0
        %2145 = vmatpush1.bf16.msra.mxu0 0
        %2146 = vmatprep.subr.bf16.mxu0 0
        %2147 = vmatpush1.bf16.msra.mxu0 0
        %2148 = vmatprep.subr.bf16.mxu0 0
        %2149 = vmatpush1.bf16.msra.mxu0 0
        %2150 = vmatprep.subr.bf16.mxu0 0
        %2151 = vmatpush1.bf16.msra.mxu0 0
        %2152 = vmatprep.subr.bf16.mxu0 0
        %2153 = vmatpush1.bf16.msra.mxu0 0
        %2154 = vmatprep.subr.bf16.mxu0 0
        %2155 = vmatpush1.bf16.msra.mxu0 0
        %2156 = vmatprep.subr.bf16.mxu0 0
        %2157 = vmatpush1.bf16.msra.mxu0 0
        %2158 = vmatprep.subr.bf16.mxu0 0
        %2159 = vmatpush1.bf16.msra.mxu0 0
        %2160 = vmatprep.mubr.bf16.mxu0 0
        %2161 = vmatmul.mubr.bf16.gmra.mrb[0].mxu0 %v2112
        %v2162 = vpop.f32.mrb[0].mxu0
        %v2163 = vadd.f32 %v2003, %v2162
        %v2164 = vpop.f32.mrb[0].mxu0
        %v2165 = vpop.f32.mrb[0].mxu0
        %v2166 = vadd.f32 %v2008, %v2165
        %v2167 = vpop.f32.mrb[0].mxu0
        %2168 = vmatprep.mubr.bf16.mxu0 0
        %2169 = vmatmul.mubr.bf16.gmra.mrb[0].mxu0 %v2113
        %v2170 = vpop.f32.mrb[0].mxu0
        %v2171 = vadd.f32 %v2013, %v2170
        %v2172 = vpop.f32.mrb[0].mxu0
        %v2173 = vpop.f32.mrb[0].mxu0
        %v2174 = vadd.f32 %v2018, %v2173
        %v2175 = vpop.f32.mrb[0].mxu0
        %2176 = vmatprep.mubr.bf16.mxu0 0
        %2177 = vmatmul.mubr.bf16.gmra.mrb[0].mxu0 %v2114
        %v2178 = vpop.f32.mrb[0].mxu0
        %v2179 = vadd.f32 %v2023, %v2178
        %v2180 = vpop.f32.mrb[0].mxu0
        %v2181 = vpop.f32.mrb[0].mxu0
        %v2182 = vadd.f32 %v2028, %v2181
        %v2183 = vpop.f32.mrb[0].mxu0
        %2184 = vmatprep.mubr.bf16.mxu0 0
        %2185 = vmatmul.mubr.bf16.gmra.mrb[0].mxu0 %v2115
        %v2186 = vpop.f32.mrb[0].mxu0
        %v2187 = vadd.f32 %v2033, %v2186
        %v2188 = vpop.f32.mrb[0].mxu0
        %v2189 = vpop.f32.mrb[0].mxu0
        %v2190 = vadd.f32 %v2038, %v2189
        %v2191 = vpop.f32.mrb[0].mxu0
        %2192 = vmatprep.mubr.bf16.mxu0 0
        %2193 = vmatmul.mubr.bf16.gmra.mrb[0].mxu0 %v2116
        %v2194 = vpop.f32.mrb[0].mxu0
        %v2195 = vadd.f32 %v2043, %v2194
        %v2196 = vpop.f32.mrb[0].mxu0
        %v2197 = vpop.f32.mrb[0].mxu0
        %v2198 = vadd.f32 %v2048, %v2197
        %v2199 = vpop.f32.mrb[0].mxu0
        %2200 = vmatprep.mubr.bf16.mxu0 0
        %2201 = vmatmul.mubr.bf16.gmra.mrb[0].mxu0 %v2117
        %v2202 = vpop.f32.mrb[0].mxu0
        %v2203 = vadd.f32 %v2053, %v2202
        %v2204 = vpop.f32.mrb[0].mxu0
        %v2205 = vpop.f32.mrb[0].mxu0
        %v2206 = vadd.f32 %v2058, %v2205
        %v2207 = vpop.f32.mrb[0].mxu0
        %2208 = vmatprep.mubr.bf16.mxu0 0
        %2209 = vmatmul.mubr.bf16.gmra.mrb[0].mxu0 %v2118
        %v2210 = vpop.f32.mrb[0].mxu0
        %v2211 = vadd.f32 %v2063, %v2210
        %v2212 = vpop.f32.mrb[0].mxu0
        %v2213 = vpop.f32.mrb[0].mxu0
        %v2214 = vadd.f32 %v2068, %v2213
        %v2215 = vpop.f32.mrb[0].mxu0
        %2216 = vmatprep.mubr.bf16.mxu0 0
        %2217 = vmatmul.mubr.bf16.gmra.mrb[0].mxu0 %v2119
        %v2218 = vpop.f32.mrb[0].mxu0
        %v2219 = vadd.f32 %v2073, %v2218
        %v2220 = vpop.f32.mrb[0].mxu0
        %v2221 = vpop.f32.mrb[0].mxu0
        %v2222 = vadd.f32 %v2078, %v2221
        %v2223 = vpop.f32.mrb[0].mxu0
        %2224 = vdwg.mxu0
        %vm2225 = vcmask 7168
        %2226 = vst.msk [vmem:[%s409] sm:$0xff] %vm2225, %v2163
        %2227 = vst.msk [vmem:[%s409 + $0x8] sm:$0xff] %vm2225, %v2166
        %2228 = vst.msk [vmem:[%s409 + $0x10] sm:$0xff] %vm2225, %v2171
        %2229 = vst.msk [vmem:[%s409 + $0x18] sm:$0xff] %vm2225, %v2174
        %2230 = vst.msk [vmem:[%s409 + $0x20] sm:$0xff] %vm2225, %v2179
        %2231 = vst.msk [vmem:[%s409 + $0x28] sm:$0xff] %vm2225, %v2182
        %2232 = vst.msk [vmem:[%s409 + $0x30] sm:$0xff] %vm2225, %v2187
        %2233 = vst.msk [vmem:[%s409 + $0x38] sm:$0xff] %vm2225, %v2190
        %2234 = vst.msk [vmem:[%s409 + $0x40] sm:$0xff] %vm2225, %v2195
        %2235 = vst.msk [vmem:[%s409 + $0x48] sm:$0xff] %vm2225, %v2198
        %2236 = vst.msk [vmem:[%s409 + $0x50] sm:$0xff] %vm2225, %v2203
        %2237 = vst.msk [vmem:[%s409 + $0x58] sm:$0xff] %vm2225, %v2206
        %2238 = vst.msk [vmem:[%s409 + $0x60] sm:$0xff] %vm2225, %v2211
        %2239 = vst.msk [vmem:[%s409 + $0x68] sm:$0xff] %vm2225, %v2214
        %2240 = vst.msk [vmem:[%s409 + $0x70] sm:$0xff] %vm2225, %v2219
        %2241 = vst.msk [vmem:[%s409 + $0x78] sm:$0xff] %vm2225, %v2222
      $region72: #{pointnet_plusplus_forward.1} parent=63 // pred_fallthru
        _
      %p2242 = scmp.lt.s32.totalorder %s26, 1
      %s2243 = scalar_select %p2242, %s26, 1
      %s2244 = smul.addr %s2243, 16
      %s2245 = smul.addr %s2244, 8
      %s2246 = scalar_lea.vmem %s11, %s2245
      // Predicated region
      $region73: #{pointnet_plusplus_forward.1} parent=63 // pred_check
        %p2247 = pneg %p290
      $region74: #{pointnet_plusplus_forward.1} parent=63 // pred_check_branch
        %2249 = sbr.rel (%p2247) target = $region76
      $region75: #{pointnet_plusplus_forward.1} parent=63 // pred_region
        _
      $region76: #{pointnet_plusplus_forward.1} parent=63 // pred_fallthru
        _
    $region64: #{pointnet_plusplus_forward.1} parent=5 // pred_fallthru
      _
    %p2250 = scmp.le.s32.totalorder 2, %s17
    // Predicated region
    $region77: #{pointnet_plusplus_forward.1} parent=5 // pred_check
      %p2251 = pneg %p2250
    $region78: #{pointnet_plusplus_forward.1} parent=5 // pred_check_branch
      %2253 = sbr.rel (%p2251) target = $region80
    $region79: #{pointnet_plusplus_forward.1} parent=5 // pred_region
      %s2254 = ssub.s32 %s17, 2
      // Predicated region
      $region81: #{pointnet_plusplus_forward.1} parent=79 // pred_check
        %p2255 = pneg %p296
      $region82: #{pointnet_plusplus_forward.1} parent=79 // pred_check_branch
        %2257 = sbr.rel (%p2255) target = $region84
      $region83: #{pointnet_plusplus_forward.1} parent=79 // pred_region
        %p2258 = scmp.lt.s32.totalorder %s28, 1
        %s2259 = scalar_select %p2258, %s28, 1
        %s2260 = smul.addr %s2259, 16
        %s2261 = smul.addr %s2260, 8
        %s2262 = scalar_lea.vmem %s11, %s2261
      $region84: #{pointnet_plusplus_forward.1} parent=79 // pred_fallthru
        _
    $region80: #{pointnet_plusplus_forward.1} parent=5 // pred_fallthru
      _
  $region6: #{pointnet_plusplus_forward.1} parent=0 // loop_footer
    %s21 = sadd.s32 1, %s17
  $region7: #{pointnet_plusplus_forward.1} parent=0 // loop_footer_branch
    %16 = sbr.rel target = $region3
  $region8: #{pointnet_plusplus_forward.1} parent=0 // loop_exit
    _

</llo_original>
